<compile_context>
chip_gen: v7x
topology: tpu7x:2x2x1
jax: 0.10.0
libtpu: 0.0.40
codegen_flags: <defaults>
</compile_context>

<pallas_src>
import jax
import jax.numpy as jnp
from jax import lax
from jax.experimental import pallas as pl
from jax.experimental.pallas import tpu as pltpu


def _round_up(x, m):
    return ((x + m - 1) // m) * m


# ------------------------------------------------------------------
# Fused kernel: time-major embedded input [T, Bp, Ep] -> logits [T, Bp, Vp],
# plus final (h, c).  Single invocation; recurrence fully in VMEM/vregs.
# ------------------------------------------------------------------
def decoder_kernel(x_ref, h0_ref, c0_ref, w_ih_ref, w_hh_ref, b_ref,
                   w_cls_ref, b_cls_ref,
                   out_ref, hT_ref, cT_ref,
                   xg_ref, h_all_ref):
    T, Bp, Ep = x_ref.shape
    Hp = h0_ref.shape[-1]
    Vp = b_cls_ref.shape[-1]

    # --- Phase 1: input projection for ALL timesteps in one big MXU matmul. ---
    # (T,Bp,Ep) -> (T*Bp,Ep) is layout-preserving (Bp mult of 8, Ep mult of 128).
    x_all = x_ref[...].reshape(T * Bp, Ep)
    xg = jnp.dot(x_all, w_ih_ref[...],
                 preferred_element_type=jnp.float32) + b_ref[...]       # [T*Bp, 4Hp]
    xg_ref[...] = xg.reshape(T, Bp, 4 * Hp)

    # Loop-invariant weight load hoisted out of the recurrence.
    w_hh = w_hh_ref[...]                                                # [Hp, 4Hp]

    # --- Phase 2: serial recurrence (only h @ w_hh + gate math per step). ---
    def step(t, carry):
        h, c = carry                                                    # each [Bp, Hp]
        gates = xg_ref[t] + jnp.dot(h, w_hh,
                                    preferred_element_type=jnp.float32)  # [Bp, 4Hp]
        # PyTorch gate order (i, f, g, o); each slice is 128-lane aligned (Hp=128k).
        i_g = jax.nn.sigmoid(gates[:, 0 * Hp:1 * Hp])
        f_g = jax.nn.sigmoid(gates[:, 1 * Hp:2 * Hp])
        g_g = jnp.tanh(gates[:, 2 * Hp:3 * Hp])
        o_g = jax.nn.sigmoid(gates[:, 3 * Hp:4 * Hp])
        c_new = f_g * c + i_g * g_g
        h_new = o_g * jnp.tanh(c_new)
        h_all_ref[t] = h_new                                            # full-tile store
        return h_new, c_new

    h_fin, c_fin = lax.fori_loop(0, T, step, (h0_ref[...], c0_ref[...]),
                                 unroll=True)
    hT_ref[...] = h_fin
    cT_ref[...] = c_fin

    # --- Phase 3: classifier for ALL timesteps in one big MXU matmul. ---
    h_all = h_all_ref[...].reshape(T * Bp, Hp)
    logits = jnp.dot(h_all, w_cls_ref[...],
                     preferred_element_type=jnp.float32) + b_cls_ref[...]   # [T*Bp, Vp]
    out_ref[...] = logits.reshape(T, Bp, Vp)


# ------------------------------------------------------------------
# Wrapper: embedding gather, concat, padding to (8,128) tiles, unpadding.
# ------------------------------------------------------------------
def _pad_gate_cols(w_t, H, Hp):
    """[rows, 4H] -> [rows, 4Hp], zero-padding each of the 4 gate blocks H->Hp."""
    rows = w_t.shape[0]
    w4 = w_t.reshape(rows, 4, H)
    w4p = jnp.zeros((rows, 4, Hp), w_t.dtype).at[:, :, :H].set(w4)
    return w4p.reshape(rows, 4 * Hp)


@jax.jit
def decoder_forward(params, features, captions, hidden):
    h0, c0 = hidden                                  # each [1, B, H]
    B, E = features.shape
    H = h0.shape[-1]
    V = params["w_cls"].shape[0]

    # Glue (XLA): embedding lookup of captions[:, :-1], prepend image features.
    embedded = jnp.take(params["embedding"], captions[:, :-1], axis=0)   # [B, Tcap-1, E]
    x = jnp.concatenate([features[:, None, :], embedded], axis=1)        # [B, T, E]
    T = x.shape[1]
    x_tm = jnp.transpose(x, (1, 0, 2))                                   # [T, B, E]

    # Pad to TPU-friendly tiles: B -> sublane mult of 8, E/H/V -> lane mult of 128.
    Bp = _round_up(max(B, 8), 8)
    Ep = _round_up(E, 128)
    Hp = _round_up(H, 128)
    Vp = _round_up(V, 128)

    f32 = jnp.float32
    x_p = jnp.zeros((T, Bp, Ep), f32).at[:, :B, :E].set(x_tm.astype(f32))
    h0_p = jnp.zeros((Bp, Hp), f32).at[:B, :H].set(h0[0].astype(f32))
    c0_p = jnp.zeros((Bp, Hp), f32).at[:B, :H].set(c0[0].astype(f32))

    # LSTM weights (transposed, per-gate column padding).
    w_ih_p = jnp.zeros((Ep, 4 * Hp), f32).at[:E, :].set(
        _pad_gate_cols(params["w_ih"].T.astype(f32), H, Hp))             # [Ep, 4Hp]
    w_hh_p = jnp.zeros((Hp, 4 * Hp), f32).at[:H, :].set(
        _pad_gate_cols(params["w_hh"].T.astype(f32), H, Hp))             # [Hp, 4Hp]
    b_lstm = _pad_gate_cols((params["b_ih"] + params["b_hh"])[None, :].astype(f32),
                            H, Hp)                                        # [1, 4Hp]

    # Classifier weights (padded). TODO(synk): for realistic vocab sizes, tile the
    # classifier matmul over Vp with its own (parallel) grid axis instead of one tile.
    w_cls_p = jnp.zeros((Hp, Vp), f32).at[:H, :V].set(params["w_cls"].T.astype(f32))
    b_cls_p = jnp.zeros((1, Vp), f32).at[0, :V].set(params["b_cls"].astype(f32))

    out_tm_p, hT_p, cT_p = pl.pallas_call(
        decoder_kernel,
        out_shape=(
            jax.ShapeDtypeStruct((T, Bp, Vp), jnp.float32),
            jax.ShapeDtypeStruct((Bp, Hp), jnp.float32),
            jax.ShapeDtypeStruct((Bp, Hp), jnp.float32),
        ),
        grid=(1,),
        in_specs=[
            pl.BlockSpec((T, Bp, Ep), lambda i: (0, 0, 0)),       # x (time-major)
            pl.BlockSpec((Bp, Hp), lambda i: (0, 0)),             # h0
            pl.BlockSpec((Bp, Hp), lambda i: (0, 0)),             # c0
            pl.BlockSpec((Ep, 4 * Hp), lambda i: (0, 0)),         # w_ih^T
            pl.BlockSpec((Hp, 4 * Hp), lambda i: (0, 0)),         # w_hh^T
            pl.BlockSpec((1, 4 * Hp), lambda i: (0, 0)),          # lstm bias
            pl.BlockSpec((Hp, Vp), lambda i: (0, 0)),             # w_cls^T
            pl.BlockSpec((1, Vp), lambda i: (0, 0)),              # b_cls
        ],
        out_specs=(
            pl.BlockSpec((T, Bp, Vp), lambda i: (0, 0, 0)),       # logits (time-major)
            pl.BlockSpec((Bp, Hp), lambda i: (0, 0)),             # h_T
            pl.BlockSpec((Bp, Hp), lambda i: (0, 0)),             # c_T
        ),
        scratch_shapes=[
            pltpu.VMEM((T, Bp, 4 * Hp), jnp.float32),             # pre-computed x-gates
            pltpu.VMEM((T, Bp, Hp), jnp.float32),                 # per-step hidden states
        ],
        compiler_params=pltpu.CompilerParams(
            dimension_semantics=("arbitrary",)),                  # single sequential call
    )(x_p, h0_p, c0_p, w_ih_p, w_hh_p, b_lstm, w_cls_p, b_cls_p)

    # Unpad + back to batch-first layout (tiny XLA ops).
    out = jnp.transpose(out_tm_p[:, :B, :V], (1, 0, 2))           # [B, T, V]
    hT = hT_p[:B, :H][None]                                       # [1, B, H]
    cT = cT_p[:B, :H][None]
    return out, (hT, cT)


# ------------------------------------------------------------------
# Pure-JAX reference (for correctness check).
# ------------------------------------------------------------------
def decoder_forward_ref(params, features, captions, hidden):
    emb = jnp.take(params["embedding"], captions[:, :-1], axis=0)
    x = jnp.concatenate([features[:, None, :], emb], axis=1)
    h, c = hidden[0][0], hidden[1][0]
    wih, whh = params["w_ih"], params["w_hh"]
    b = params["b_ih"] + params["b_hh"]
    H = h.shape[-1]
    outs = []
    for t in range(x.shape[1]):
        g = x[:, t] @ wih.T + h @ whh.T + b
        i_g = jax.nn.sigmoid(g[:, :H])
        f_g = jax.nn.sigmoid(g[:, H:2 * H])
        g_g = jnp.tanh(g[:, 2 * H:3 * H])
        o_g = jax.nn.sigmoid(g[:, 3 * H:])
        c = f_g * c + i_g * g_g
        h = o_g * jnp.tanh(c)
        outs.append(h)
    lstm_out = jnp.stack(outs, axis=1)
    logits = lstm_out @ params["w_cls"].T + params["b_cls"]
    return logits, (h[None], c[None])


def init_params(key, embed_size, hidden_size, vocab_size):
    ks = jax.random.split(key, 7)
    s = 0.1
    return {
        "embedding": jax.random.normal(ks[0], (vocab_size, embed_size), jnp.float32) * s,
        "w_ih": jax.random.normal(ks[1], (4 * hidden_size, embed_size), jnp.float32) * s,
        "w_hh": jax.random.normal(ks[2], (4 * hidden_size, hidden_size), jnp.float32) * s,
        "b_ih": jax.random.normal(ks[3], (4 * hidden_size,), jnp.float32) * s,
        "b_hh": jax.random.normal(ks[4], (4 * hidden_size,), jnp.float32) * s,
        "w_cls": jax.random.normal(ks[5], (vocab_size, hidden_size), jnp.float32) * s,
        "b_cls": jax.random.normal(ks[6], (vocab_size,), jnp.float32) * s,
    }


if __name__ == "__main__":
    embed_size, hidden_size, vocab_size = 32, 32, 48
    B, Tcap = 2, 8                                   # captions length 8 -> sequence length 8

    key = jax.random.PRNGKey(0)
    kp, kf, kc = jax.random.split(key, 3)
    params = init_params(kp, embed_size, hidden_size, vocab_size)

    features = jax.random.normal(kf, (B, embed_size), jnp.float32)
    captions = jax.random.randint(kc, (B, Tcap), 0, vocab_size, dtype=jnp.int32)
    hidden = (jnp.zeros((1, B, hidden_size), jnp.float32),
              jnp.zeros((1, B, hidden_size), jnp.float32))

    (out, (hT, cT)) = decoder_forward(params, features, captions, hidden)
    jax.block_until_ready((out, hT, cT))

    out_ref, (hT_ref, cT_ref) = decoder_forward_ref(params, features, captions, hidden)
    assert out.shape == (B, Tcap, vocab_size)
    assert hT.shape == (1, B, hidden_size) and cT.shape == (1, B, hidden_size)
    assert jnp.allclose(out, out_ref, atol=2e-4, rtol=1e-3), float(jnp.max(jnp.abs(out - out_ref)))
    assert jnp.allclose(hT, hT_ref, atol=2e-4, rtol=1e-3)
    assert jnp.allclose(cT, cT_ref, atol=2e-4, rtol=1e-3)

    print("KERNEL_OK")
</pallas_src>

<mosaic_0001>
module attributes {stable_mosaic.version = 11 : i64} {
  func.func @decoder_kernel(%arg0: i32, %arg1: memref<8x8x128xf32, #tpu.memory_space<vmem>>, %arg2: memref<8x128xf32, #tpu.memory_space<vmem>>, %arg3: memref<8x128xf32, #tpu.memory_space<vmem>>, %arg4: memref<128x512xf32, #tpu.memory_space<vmem>>, %arg5: memref<128x512xf32, #tpu.memory_space<vmem>>, %arg6: memref<1x512xf32, #tpu.memory_space<vmem>>, %arg7: memref<128x128xf32, #tpu.memory_space<vmem>>, %arg8: memref<1x128xf32, #tpu.memory_space<vmem>>, %arg9: memref<8x8x128xf32, #tpu.memory_space<vmem>>, %arg10: memref<8x128xf32, #tpu.memory_space<vmem>>, %arg11: memref<8x128xf32, #tpu.memory_space<vmem>>, %arg12: memref<8x8x512xf32, #tpu.memory_space<vmem>>, %arg13: memref<8x8x128xf32, #tpu.memory_space<vmem>>) attributes {dimension_semantics = [#tpu.dimension_semantics<arbitrary>], iteration_bounds = array<i64: 1>, scalar_prefetch = 0 : i64, scratch_operands = 2 : i64, tpu.core_type = #tpu.core_type<tc>, window_params = [{pipeline_mode = #tpu.pipeline_mode<synchronous>, transform_indices = @transform_0, window_bounds = array<i64: 8, 8, 128>}, {pipeline_mode = #tpu.pipeline_mode<synchronous>, transform_indices = @transform_1, window_bounds = array<i64: 8, 128>}, {pipeline_mode = #tpu.pipeline_mode<synchronous>, transform_indices = @transform_2, window_bounds = array<i64: 8, 128>}, {pipeline_mode = #tpu.pipeline_mode<synchronous>, transform_indices = @transform_3, window_bounds = array<i64: 128, 512>}, {pipeline_mode = #tpu.pipeline_mode<synchronous>, transform_indices = @transform_4, window_bounds = array<i64: 128, 512>}, {pipeline_mode = #tpu.pipeline_mode<synchronous>, transform_indices = @transform_5, window_bounds = array<i64: 1, 512>}, {pipeline_mode = #tpu.pipeline_mode<synchronous>, transform_indices = @transform_6, window_bounds = array<i64: 128, 128>}, {pipeline_mode = #tpu.pipeline_mode<synchronous>, transform_indices = @transform_7, window_bounds = array<i64: 1, 128>}, {pipeline_mode = #tpu.pipeline_mode<synchronous>, transform_indices = @transform_8, window_bounds = array<i64: 8, 8, 128>}, {pipeline_mode = #tpu.pipeline_mode<synchronous>, transform_indices = @transform_9, window_bounds = array<i64: 8, 128>}, {pipeline_mode = #tpu.pipeline_mode<synchronous>, transform_indices = @transform_10, window_bounds = array<i64: 8, 128>}]} {
    %c0 = arith.constant 0 : index
    %c0_0 = arith.constant 0 : index
    %c0_1 = arith.constant 0 : index
    %0 = vector.load %arg1[%c0, %c0_0, %c0_1] : memref<8x8x128xf32, #tpu.memory_space<vmem>>, vector<8x8x128xf32>
    %1 = vector.shape_cast %0 : vector<8x8x128xf32> to vector<64x128xf32>
    %c0_2 = arith.constant 0 : index
    %c0_3 = arith.constant 0 : index
    %2 = vector.load %arg4[%c0_2, %c0_3] : memref<128x512xf32, #tpu.memory_space<vmem>>, vector<128x512xf32>
    %cst = arith.constant dense<0.000000e+00> : vector<64x512xf32>
    %3 = tpu.matmul %1, %2, %cst {dimension_numbers = #tpu.dot_dimension_numbers<[1], [0], [0], [1], [0, 0, 1, 1], [], []>} : vector<64x128xf32>, vector<128x512xf32>, vector<64x512xf32> -> vector<64x512xf32>
    %c0_4 = arith.constant 0 : index
    %c0_5 = arith.constant 0 : index
    %4 = vector.load %arg6[%c0_4, %c0_5] : memref<1x512xf32, #tpu.memory_space<vmem>>, vector<1x512xf32>
    %5 = vector.broadcast %4 : vector<1x512xf32> to vector<64x512xf32>
    %6 = arith.addf %3, %5 : vector<64x512xf32>
    %7 = vector.shape_cast %6 : vector<64x512xf32> to vector<8x8x512xf32>
    %c0_6 = arith.constant 0 : index
    %c0_7 = arith.constant 0 : index
    %c0_8 = arith.constant 0 : index
    %8 = vector.load %arg12[%c0_6, %c0_7, %c0_8] : memref<8x8x512xf32, #tpu.memory_space<vmem>>, vector<8x8x512xf32>
    tpu.vector_store %arg12[%c0_6, %c0_7, %c0_8], %7 {strides = array<i32>} : memref<8x8x512xf32, #tpu.memory_space<vmem>>, vector<8x8x512xf32>,
    %c0_9 = arith.constant 0 : index
    %c0_10 = arith.constant 0 : index
    %9 = vector.load %arg5[%c0_9, %c0_10] : memref<128x512xf32, #tpu.memory_space<vmem>>, vector<128x512xf32>
    %c0_11 = arith.constant 0 : index
    %c0_12 = arith.constant 0 : index
    %10 = vector.load %arg2[%c0_11, %c0_12] : memref<8x128xf32, #tpu.memory_space<vmem>>, vector<8x128xf32>
    %c0_13 = arith.constant 0 : index
    %c0_14 = arith.constant 0 : index
    %11 = vector.load %arg3[%c0_13, %c0_14] : memref<8x128xf32, #tpu.memory_space<vmem>>, vector<8x128xf32>
    %c0_i32 = arith.constant 0 : i32
    %12 = arith.index_cast %c0_i32 : i32 to index
    %c0_15 = arith.constant 0 : index
    %c0_16 = arith.constant 0 : index
    %13 = vector.load %arg12[%12, %c0_15, %c0_16] : memref<8x8x512xf32, #tpu.memory_space<vmem>>, vector<1x8x512xf32>
    %14 = vector.shape_cast %13 : vector<1x8x512xf32> to vector<8x512xf32>
    %cst_17 = arith.constant dense<0.000000e+00> : vector<8x512xf32>
    %15 = tpu.matmul %10, %9, %cst_17 {dimension_numbers = #tpu.dot_dimension_numbers<[1], [0], [0], [1], [0, 0, 1, 1], [], []>} : vector<8x128xf32>, vector<128x512xf32>, vector<8x512xf32> -> vector<8x512xf32>
    %16 = arith.addf %14, %15 : vector<8x512xf32>
    %17 = vector.extract_strided_slice %16 {offsets = [0, 0], sizes = [8, 128], strides = [1, 1]} : vector<8x512xf32> to vector<8x128xf32>
    %18 = arith.negf %17 : vector<8x128xf32>
    %19 = math.exp %18 : vector<8x128xf32>
    %cst_18 = arith.constant 1.000000e+00 : f32
    %20 = vector.broadcast %cst_18 : f32 to vector<8x128xf32>
    %21 = arith.addf %20, %19 : vector<8x128xf32>
    %22 = arith.divf %20, %21 : vector<8x128xf32>
    %23 = vector.extract_strided_slice %16 {offsets = [0, 128], sizes = [8, 128], strides = [1, 1]} : vector<8x512xf32> to vector<8x128xf32>
    %24 = arith.negf %23 : vector<8x128xf32>
    %25 = math.exp %24 : vector<8x128xf32>
    %cst_19 = arith.constant 1.000000e+00 : f32
    %26 = vector.broadcast %cst_19 : f32 to vector<8x128xf32>
    %27 = arith.addf %26, %25 : vector<8x128xf32>
    %28 = arith.divf %26, %27 : vector<8x128xf32>
    %29 = vector.extract_strided_slice %16 {offsets = [0, 256], sizes = [8, 128], strides = [1, 1]} : vector<8x512xf32> to vector<8x128xf32>
    %30 = math.tanh %29 : vector<8x128xf32>
    %31 = vector.extract_strided_slice %16 {offsets = [0, 384], sizes = [8, 128], strides = [1, 1]} : vector<8x512xf32> to vector<8x128xf32>
    %32 = arith.negf %31 : vector<8x128xf32>
    %33 = math.exp %32 : vector<8x128xf32>
    %cst_20 = arith.constant 1.000000e+00 : f32
    %34 = vector.broadcast %cst_20 : f32 to vector<8x128xf32>
    %35 = arith.addf %34, %33 : vector<8x128xf32>
    %36 = arith.divf %34, %35 : vector<8x128xf32>
    %37 = arith.mulf %28, %11 : vector<8x128xf32>
    %38 = arith.mulf %22, %30 : vector<8x128xf32>
    %39 = arith.addf %37, %38 : vector<8x128xf32>
    %40 = math.tanh %39 : vector<8x128xf32>
    %41 = arith.mulf %36, %40 : vector<8x128xf32>
    %42 = arith.index_cast %c0_i32 : i32 to index
    %c0_21 = arith.constant 0 : index
    %c0_22 = arith.constant 0 : index
    %43 = vector.load %arg13[%42, %c0_21, %c0_22] : memref<8x8x128xf32, #tpu.memory_space<vmem>>, vector<1x8x128xf32>
    %44 = vector.shape_cast %43 : vector<1x8x128xf32> to vector<8x128xf32>
    %45 = vector.shape_cast %41 : vector<8x128xf32> to vector<1x8x128xf32>
    tpu.vector_store %arg13[%42, %c0_21, %c0_22], %45 {strides = array<i32>} : memref<8x8x128xf32, #tpu.memory_space<vmem>>, vector<1x8x128xf32>,
    %c1_i32 = arith.constant 1 : i32
    %46 = arith.index_cast %c1_i32 : i32 to index
    %c0_23 = arith.constant 0 : index
    %c0_24 = arith.constant 0 : index
    %47 = vector.load %arg12[%46, %c0_23, %c0_24] : memref<8x8x512xf32, #tpu.memory_space<vmem>>, vector<1x8x512xf32>
    %48 = vector.shape_cast %47 : vector<1x8x512xf32> to vector<8x512xf32>
    %cst_25 = arith.constant dense<0.000000e+00> : vector<8x512xf32>
    %49 = tpu.matmul %41, %9, %cst_25 {dimension_numbers = #tpu.dot_dimension_numbers<[1], [0], [0], [1], [0, 0, 1, 1], [], []>} : vector<8x128xf32>, vector<128x512xf32>, vector<8x512xf32> -> vector<8x512xf32>
    %50 = arith.addf %48, %49 : vector<8x512xf32>
    %51 = vector.extract_strided_slice %50 {offsets = [0, 0], sizes = [8, 128], strides = [1, 1]} : vector<8x512xf32> to vector<8x128xf32>
    %52 = arith.negf %51 : vector<8x128xf32>
    %53 = math.exp %52 : vector<8x128xf32>
    %cst_26 = arith.constant 1.000000e+00 : f32
    %54 = vector.broadcast %cst_26 : f32 to vector<8x128xf32>
    %55 = arith.addf %54, %53 : vector<8x128xf32>
    %56 = arith.divf %54, %55 : vector<8x128xf32>
    %57 = vector.extract_strided_slice %50 {offsets = [0, 128], sizes = [8, 128], strides = [1, 1]} : vector<8x512xf32> to vector<8x128xf32>
    %58 = arith.negf %57 : vector<8x128xf32>
    %59 = math.exp %58 : vector<8x128xf32>
    %cst_27 = arith.constant 1.000000e+00 : f32
    %60 = vector.broadcast %cst_27 : f32 to vector<8x128xf32>
    %61 = arith.addf %60, %59 : vector<8x128xf32>
    %62 = arith.divf %60, %61 : vector<8x128xf32>
    %63 = vector.extract_strided_slice %50 {offsets = [0, 256], sizes = [8, 128], strides = [1, 1]} : vector<8x512xf32> to vector<8x128xf32>
    %64 = math.tanh %63 : vector<8x128xf32>
    %65 = vector.extract_strided_slice %50 {offsets = [0, 384], sizes = [8, 128], strides = [1, 1]} : vector<8x512xf32> to vector<8x128xf32>
    %66 = arith.negf %65 : vector<8x128xf32>
    %67 = math.exp %66 : vector<8x128xf32>
    %cst_28 = arith.constant 1.000000e+00 : f32
    %68 = vector.broadcast %cst_28 : f32 to vector<8x128xf32>
    %69 = arith.addf %68, %67 : vector<8x128xf32>
    %70 = arith.divf %68, %69 : vector<8x128xf32>
    %71 = arith.mulf %62, %39 : vector<8x128xf32>
    %72 = arith.mulf %56, %64 : vector<8x128xf32>
    %73 = arith.addf %71, %72 : vector<8x128xf32>
    %74 = math.tanh %73 : vector<8x128xf32>
    %75 = arith.mulf %70, %74 : vector<8x128xf32>
    %76 = arith.index_cast %c1_i32 : i32 to index
    %c0_29 = arith.constant 0 : index
    %c0_30 = arith.constant 0 : index
    %77 = vector.load %arg13[%76, %c0_29, %c0_30] : memref<8x8x128xf32, #tpu.memory_space<vmem>>, vector<1x8x128xf32>
    %78 = vector.shape_cast %77 : vector<1x8x128xf32> to vector<8x128xf32>
    %79 = vector.shape_cast %75 : vector<8x128xf32> to vector<1x8x128xf32>
    tpu.vector_store %arg13[%76, %c0_29, %c0_30], %79 {strides = array<i32>} : memref<8x8x128xf32, #tpu.memory_space<vmem>>, vector<1x8x128xf32>,
    %c2_i32 = arith.constant 2 : i32
    %80 = arith.index_cast %c2_i32 : i32 to index
    %c0_31 = arith.constant 0 : index
    %c0_32 = arith.constant 0 : index
    %81 = vector.load %arg12[%80, %c0_31, %c0_32] : memref<8x8x512xf32, #tpu.memory_space<vmem>>, vector<1x8x512xf32>
    %82 = vector.shape_cast %81 : vector<1x8x512xf32> to vector<8x512xf32>
    %cst_33 = arith.constant dense<0.000000e+00> : vector<8x512xf32>
    %83 = tpu.matmul %75, %9, %cst_33 {dimension_numbers = #tpu.dot_dimension_numbers<[1], [0], [0], [1], [0, 0, 1, 1], [], []>} : vector<8x128xf32>, vector<128x512xf32>, vector<8x512xf32> -> vector<8x512xf32>
    %84 = arith.addf %82, %83 : vector<8x512xf32>
    %85 = vector.extract_strided_slice %84 {offsets = [0, 0], sizes = [8, 128], strides = [1, 1]} : vector<8x512xf32> to vector<8x128xf32>
    %86 = arith.negf %85 : vector<8x128xf32>
    %87 = math.exp %86 : vector<8x128xf32>
    %cst_34 = arith.constant 1.000000e+00 : f32
    %88 = vector.broadcast %cst_34 : f32 to vector<8x128xf32>
    %89 = arith.addf %88, %87 : vector<8x128xf32>
    %90 = arith.divf %88, %89 : vector<8x128xf32>
    %91 = vector.extract_strided_slice %84 {offsets = [0, 128], sizes = [8, 128], strides = [1, 1]} : vector<8x512xf32> to vector<8x128xf32>
    %92 = arith.negf %91 : vector<8x128xf32>
    %93 = math.exp %92 : vector<8x128xf32>
    %cst_35 = arith.constant 1.000000e+00 : f32
    %94 = vector.broadcast %cst_35 : f32 to vector<8x128xf32>
    %95 = arith.addf %94, %93 : vector<8x128xf32>
    %96 = arith.divf %94, %95 : vector<8x128xf32>
    %97 = vector.extract_strided_slice %84 {offsets = [0, 256], sizes = [8, 128], strides = [1, 1]} : vector<8x512xf32> to vector<8x128xf32>
    %98 = math.tanh %97 : vector<8x128xf32>
    %99 = vector.extract_strided_slice %84 {offsets = [0, 384], sizes = [8, 128], strides = [1, 1]} : vector<8x512xf32> to vector<8x128xf32>
    %100 = arith.negf %99 : vector<8x128xf32>
    %101 = math.exp %100 : vector<8x128xf32>
    %cst_36 = arith.constant 1.000000e+00 : f32
    %102 = vector.broadcast %cst_36 : f32 to vector<8x128xf32>
    %103 = arith.addf %102, %101 : vector<8x128xf32>
    %104 = arith.divf %102, %103 : vector<8x128xf32>
    %105 = arith.mulf %96, %73 : vector<8x128xf32>
    %106 = arith.mulf %90, %98 : vector<8x128xf32>
    %107 = arith.addf %105, %106 : vector<8x128xf32>
    %108 = math.tanh %107 : vector<8x128xf32>
    %109 = arith.mulf %104, %108 : vector<8x128xf32>
    %110 = arith.index_cast %c2_i32 : i32 to index
    %c0_37 = arith.constant 0 : index
    %c0_38 = arith.constant 0 : index
    %111 = vector.load %arg13[%110, %c0_37, %c0_38] : memref<8x8x128xf32, #tpu.memory_space<vmem>>, vector<1x8x128xf32>
    %112 = vector.shape_cast %111 : vector<1x8x128xf32> to vector<8x128xf32>
    %113 = vector.shape_cast %109 : vector<8x128xf32> to vector<1x8x128xf32>
    tpu.vector_store %arg13[%110, %c0_37, %c0_38], %113 {strides = array<i32>} : memref<8x8x128xf32, #tpu.memory_space<vmem>>, vector<1x8x128xf32>,
    %c3_i32 = arith.constant 3 : i32
    %114 = arith.index_cast %c3_i32 : i32 to index
    %c0_39 = arith.constant 0 : index
    %c0_40 = arith.constant 0 : index
    %115 = vector.load %arg12[%114, %c0_39, %c0_40] : memref<8x8x512xf32, #tpu.memory_space<vmem>>, vector<1x8x512xf32>
    %116 = vector.shape_cast %115 : vector<1x8x512xf32> to vector<8x512xf32>
    %cst_41 = arith.constant dense<0.000000e+00> : vector<8x512xf32>
    %117 = tpu.matmul %109, %9, %cst_41 {dimension_numbers = #tpu.dot_dimension_numbers<[1], [0], [0], [1], [0, 0, 1, 1], [], []>} : vector<8x128xf32>, vector<128x512xf32>, vector<8x512xf32> -> vector<8x512xf32>
    %118 = arith.addf %116, %117 : vector<8x512xf32>
    %119 = vector.extract_strided_slice %118 {offsets = [0, 0], sizes = [8, 128], strides = [1, 1]} : vector<8x512xf32> to vector<8x128xf32>
    %120 = arith.negf %119 : vector<8x128xf32>
    %121 = math.exp %120 : vector<8x128xf32>
    %cst_42 = arith.constant 1.000000e+00 : f32
    %122 = vector.broadcast %cst_42 : f32 to vector<8x128xf32>
    %123 = arith.addf %122, %121 : vector<8x128xf32>
    %124 = arith.divf %122, %123 : vector<8x128xf32>
    %125 = vector.extract_strided_slice %118 {offsets = [0, 128], sizes = [8, 128], strides = [1, 1]} : vector<8x512xf32> to vector<8x128xf32>
    %126 = arith.negf %125 : vector<8x128xf32>
    %127 = math.exp %126 : vector<8x128xf32>
    %cst_43 = arith.constant 1.000000e+00 : f32
    %128 = vector.broadcast %cst_43 : f32 to vector<8x128xf32>
    %129 = arith.addf %128, %127 : vector<8x128xf32>
    %130 = arith.divf %128, %129 : vector<8x128xf32>
    %131 = vector.extract_strided_slice %118 {offsets = [0, 256], sizes = [8, 128], strides = [1, 1]} : vector<8x512xf32> to vector<8x128xf32>
    %132 = math.tanh %131 : vector<8x128xf32>
    %133 = vector.extract_strided_slice %118 {offsets = [0, 384], sizes = [8, 128], strides = [1, 1]} : vector<8x512xf32> to vector<8x128xf32>
    %134 = arith.negf %133 : vector<8x128xf32>
    %135 = math.exp %134 : vector<8x128xf32>
    %cst_44 = arith.constant 1.000000e+00 : f32
    %136 = vector.broadcast %cst_44 : f32 to vector<8x128xf32>
    %137 = arith.addf %136, %135 : vector<8x128xf32>
    %138 = arith.divf %136, %137 : vector<8x128xf32>
    %139 = arith.mulf %130, %107 : vector<8x128xf32>
    %140 = arith.mulf %124, %132 : vector<8x128xf32>
    %141 = arith.addf %139, %140 : vector<8x128xf32>
    %142 = math.tanh %141 : vector<8x128xf32>
    %143 = arith.mulf %138, %142 : vector<8x128xf32>
    %144 = arith.index_cast %c3_i32 : i32 to index
    %c0_45 = arith.constant 0 : index
    %c0_46 = arith.constant 0 : index
    %145 = vector.load %arg13[%144, %c0_45, %c0_46] : memref<8x8x128xf32, #tpu.memory_space<vmem>>, vector<1x8x128xf32>
    %146 = vector.shape_cast %145 : vector<1x8x128xf32> to vector<8x128xf32>
    %147 = vector.shape_cast %143 : vector<8x128xf32> to vector<1x8x128xf32>
    tpu.vector_store %arg13[%144, %c0_45, %c0_46], %147 {strides = array<i32>} : memref<8x8x128xf32, #tpu.memory_space<vmem>>, vector<1x8x128xf32>,
    %c4_i32 = arith.constant 4 : i32
    %148 = arith.index_cast %c4_i32 : i32 to index
    %c0_47 = arith.constant 0 : index
    %c0_48 = arith.constant 0 : index
    %149 = vector.load %arg12[%148, %c0_47, %c0_48] : memref<8x8x512xf32, #tpu.memory_space<vmem>>, vector<1x8x512xf32>
    %150 = vector.shape_cast %149 : vector<1x8x512xf32> to vector<8x512xf32>
    %cst_49 = arith.constant dense<0.000000e+00> : vector<8x512xf32>
    %151 = tpu.matmul %143, %9, %cst_49 {dimension_numbers = #tpu.dot_dimension_numbers<[1], [0], [0], [1], [0, 0, 1, 1], [], []>} : vector<8x128xf32>, vector<128x512xf32>, vector<8x512xf32> -> vector<8x512xf32>
    %152 = arith.addf %150, %151 : vector<8x512xf32>
    %153 = vector.extract_strided_slice %152 {offsets = [0, 0], sizes = [8, 128], strides = [1, 1]} : vector<8x512xf32> to vector<8x128xf32>
    %154 = arith.negf %153 : vector<8x128xf32>
    %155 = math.exp %154 : vector<8x128xf32>
    %cst_50 = arith.constant 1.000000e+00 : f32
    %156 = vector.broadcast %cst_50 : f32 to vector<8x128xf32>
    %157 = arith.addf %156, %155 : vector<8x128xf32>
    %158 = arith.divf %156, %157 : vector<8x128xf32>
    %159 = vector.extract_strided_slice %152 {offsets = [0, 128], sizes = [8, 128], strides = [1, 1]} : vector<8x512xf32> to vector<8x128xf32>
    %160 = arith.negf %159 : vector<8x128xf32>
    %161 = math.exp %160 : vector<8x128xf32>
    %cst_51 = arith.constant 1.000000e+00 : f32
    %162 = vector.broadcast %cst_51 : f32 to vector<8x128xf32>
    %163 = arith.addf %162, %161 : vector<8x128xf32>
    %164 = arith.divf %162, %163 : vector<8x128xf32>
    %165 = vector.extract_strided_slice %152 {offsets = [0, 256], sizes = [8, 128], strides = [1, 1]} : vector<8x512xf32> to vector<8x128xf32>
    %166 = math.tanh %165 : vector<8x128xf32>
    %167 = vector.extract_strided_slice %152 {offsets = [0, 384], sizes = [8, 128], strides = [1, 1]} : vector<8x512xf32> to vector<8x128xf32>
    %168 = arith.negf %167 : vector<8x128xf32>
    %169 = math.exp %168 : vector<8x128xf32>
    %cst_52 = arith.constant 1.000000e+00 : f32
    %170 = vector.broadcast %cst_52 : f32 to vector<8x128xf32>
    %171 = arith.addf %170, %169 : vector<8x128xf32>
    %172 = arith.divf %170, %171 : vector<8x128xf32>
    %173 = arith.mulf %164, %141 : vector<8x128xf32>
    %174 = arith.mulf %158, %166 : vector<8x128xf32>
    %175 = arith.addf %173, %174 : vector<8x128xf32>
    %176 = math.tanh %175 : vector<8x128xf32>
    %177 = arith.mulf %172, %176 : vector<8x128xf32>
    %178 = arith.index_cast %c4_i32 : i32 to index
    %c0_53 = arith.constant 0 : index
    %c0_54 = arith.constant 0 : index
    %179 = vector.load %arg13[%178, %c0_53, %c0_54] : memref<8x8x128xf32, #tpu.memory_space<vmem>>, vector<1x8x128xf32>
    %180 = vector.shape_cast %179 : vector<1x8x128xf32> to vector<8x128xf32>
    %181 = vector.shape_cast %177 : vector<8x128xf32> to vector<1x8x128xf32>
    tpu.vector_store %arg13[%178, %c0_53, %c0_54], %181 {strides = array<i32>} : memref<8x8x128xf32, #tpu.memory_space<vmem>>, vector<1x8x128xf32>,
    %c5_i32 = arith.constant 5 : i32
    %182 = arith.index_cast %c5_i32 : i32 to index
    %c0_55 = arith.constant 0 : index
    %c0_56 = arith.constant 0 : index
    %183 = vector.load %arg12[%182, %c0_55, %c0_56] : memref<8x8x512xf32, #tpu.memory_space<vmem>>, vector<1x8x512xf32>
    %184 = vector.shape_cast %183 : vector<1x8x512xf32> to vector<8x512xf32>
    %cst_57 = arith.constant dense<0.000000e+00> : vector<8x512xf32>
    %185 = tpu.matmul %177, %9, %cst_57 {dimension_numbers = #tpu.dot_dimension_numbers<[1], [0], [0], [1], [0, 0, 1, 1], [], []>} : vector<8x128xf32>, vector<128x512xf32>, vector<8x512xf32> -> vector<8x512xf32>
    %186 = arith.addf %184, %185 : vector<8x512xf32>
    %187 = vector.extract_strided_slice %186 {offsets = [0, 0], sizes = [8, 128], strides = [1, 1]} : vector<8x512xf32> to vector<8x128xf32>
    %188 = arith.negf %187 : vector<8x128xf32>
    %189 = math.exp %188 : vector<8x128xf32>
    %cst_58 = arith.constant 1.000000e+00 : f32
    %190 = vector.broadcast %cst_58 : f32 to vector<8x128xf32>
    %191 = arith.addf %190, %189 : vector<8x128xf32>
    %192 = arith.divf %190, %191 : vector<8x128xf32>
    %193 = vector.extract_strided_slice %186 {offsets = [0, 128], sizes = [8, 128], strides = [1, 1]} : vector<8x512xf32> to vector<8x128xf32>
    %194 = arith.negf %193 : vector<8x128xf32>
    %195 = math.exp %194 : vector<8x128xf32>
    %cst_59 = arith.constant 1.000000e+00 : f32
    %196 = vector.broadcast %cst_59 : f32 to vector<8x128xf32>
    %197 = arith.addf %196, %195 : vector<8x128xf32>
    %198 = arith.divf %196, %197 : vector<8x128xf32>
    %199 = vector.extract_strided_slice %186 {offsets = [0, 256], sizes = [8, 128], strides = [1, 1]} : vector<8x512xf32> to vector<8x128xf32>
    %200 = math.tanh %199 : vector<8x128xf32>
    %201 = vector.extract_strided_slice %186 {offsets = [0, 384], sizes = [8, 128], strides = [1, 1]} : vector<8x512xf32> to vector<8x128xf32>
    %202 = arith.negf %201 : vector<8x128xf32>
    %203 = math.exp %202 : vector<8x128xf32>
    %cst_60 = arith.constant 1.000000e+00 : f32
    %204 = vector.broadcast %cst_60 : f32 to vector<8x128xf32>
    %205 = arith.addf %204, %203 : vector<8x128xf32>
    %206 = arith.divf %204, %205 : vector<8x128xf32>
    %207 = arith.mulf %198, %175 : vector<8x128xf32>
    %208 = arith.mulf %192, %200 : vector<8x128xf32>
    %209 = arith.addf %207, %208 : vector<8x128xf32>
    %210 = math.tanh %209 : vector<8x128xf32>
    %211 = arith.mulf %206, %210 : vector<8x128xf32>
    %212 = arith.index_cast %c5_i32 : i32 to index
    %c0_61 = arith.constant 0 : index
    %c0_62 = arith.constant 0 : index
    %213 = vector.load %arg13[%212, %c0_61, %c0_62] : memref<8x8x128xf32, #tpu.memory_space<vmem>>, vector<1x8x128xf32>
    %214 = vector.shape_cast %213 : vector<1x8x128xf32> to vector<8x128xf32>
    %215 = vector.shape_cast %211 : vector<8x128xf32> to vector<1x8x128xf32>
    tpu.vector_store %arg13[%212, %c0_61, %c0_62], %215 {strides = array<i32>} : memref<8x8x128xf32, #tpu.memory_space<vmem>>, vector<1x8x128xf32>,
    %c6_i32 = arith.constant 6 : i32
    %216 = arith.index_cast %c6_i32 : i32 to index
    %c0_63 = arith.constant 0 : index
    %c0_64 = arith.constant 0 : index
    %217 = vector.load %arg12[%216, %c0_63, %c0_64] : memref<8x8x512xf32, #tpu.memory_space<vmem>>, vector<1x8x512xf32>
    %218 = vector.shape_cast %217 : vector<1x8x512xf32> to vector<8x512xf32>
    %cst_65 = arith.constant dense<0.000000e+00> : vector<8x512xf32>
    %219 = tpu.matmul %211, %9, %cst_65 {dimension_numbers = #tpu.dot_dimension_numbers<[1], [0], [0], [1], [0, 0, 1, 1], [], []>} : vector<8x128xf32>, vector<128x512xf32>, vector<8x512xf32> -> vector<8x512xf32>
    %220 = arith.addf %218, %219 : vector<8x512xf32>
    %221 = vector.extract_strided_slice %220 {offsets = [0, 0], sizes = [8, 128], strides = [1, 1]} : vector<8x512xf32> to vector<8x128xf32>
    %222 = arith.negf %221 : vector<8x128xf32>
    %223 = math.exp %222 : vector<8x128xf32>
    %cst_66 = arith.constant 1.000000e+00 : f32
    %224 = vector.broadcast %cst_66 : f32 to vector<8x128xf32>
    %225 = arith.addf %224, %223 : vector<8x128xf32>
    %226 = arith.divf %224, %225 : vector<8x128xf32>
    %227 = vector.extract_strided_slice %220 {offsets = [0, 128], sizes = [8, 128], strides = [1, 1]} : vector<8x512xf32> to vector<8x128xf32>
    %228 = arith.negf %227 : vector<8x128xf32>
    %229 = math.exp %228 : vector<8x128xf32>
    %cst_67 = arith.constant 1.000000e+00 : f32
    %230 = vector.broadcast %cst_67 : f32 to vector<8x128xf32>
    %231 = arith.addf %230, %229 : vector<8x128xf32>
    %232 = arith.divf %230, %231 : vector<8x128xf32>
    %233 = vector.extract_strided_slice %220 {offsets = [0, 256], sizes = [8, 128], strides = [1, 1]} : vector<8x512xf32> to vector<8x128xf32>
    %234 = math.tanh %233 : vector<8x128xf32>
    %235 = vector.extract_strided_slice %220 {offsets = [0, 384], sizes = [8, 128], strides = [1, 1]} : vector<8x512xf32> to vector<8x128xf32>
    %236 = arith.negf %235 : vector<8x128xf32>
    %237 = math.exp %236 : vector<8x128xf32>
    %cst_68 = arith.constant 1.000000e+00 : f32
    %238 = vector.broadcast %cst_68 : f32 to vector<8x128xf32>
    %239 = arith.addf %238, %237 : vector<8x128xf32>
    %240 = arith.divf %238, %239 : vector<8x128xf32>
    %241 = arith.mulf %232, %209 : vector<8x128xf32>
    %242 = arith.mulf %226, %234 : vector<8x128xf32>
    %243 = arith.addf %241, %242 : vector<8x128xf32>
    %244 = math.tanh %243 : vector<8x128xf32>
    %245 = arith.mulf %240, %244 : vector<8x128xf32>
    %246 = arith.index_cast %c6_i32 : i32 to index
    %c0_69 = arith.constant 0 : index
    %c0_70 = arith.constant 0 : index
    %247 = vector.load %arg13[%246, %c0_69, %c0_70] : memref<8x8x128xf32, #tpu.memory_space<vmem>>, vector<1x8x128xf32>
    %248 = vector.shape_cast %247 : vector<1x8x128xf32> to vector<8x128xf32>
    %249 = vector.shape_cast %245 : vector<8x128xf32> to vector<1x8x128xf32>
    tpu.vector_store %arg13[%246, %c0_69, %c0_70], %249 {strides = array<i32>} : memref<8x8x128xf32, #tpu.memory_space<vmem>>, vector<1x8x128xf32>,
    %c7_i32 = arith.constant 7 : i32
    %250 = arith.index_cast %c7_i32 : i32 to index
    %c0_71 = arith.constant 0 : index
    %c0_72 = arith.constant 0 : index
    %251 = vector.load %arg12[%250, %c0_71, %c0_72] : memref<8x8x512xf32, #tpu.memory_space<vmem>>, vector<1x8x512xf32>
    %252 = vector.shape_cast %251 : vector<1x8x512xf32> to vector<8x512xf32>
    %cst_73 = arith.constant dense<0.000000e+00> : vector<8x512xf32>
    %253 = tpu.matmul %245, %9, %cst_73 {dimension_numbers = #tpu.dot_dimension_numbers<[1], [0], [0], [1], [0, 0, 1, 1], [], []>} : vector<8x128xf32>, vector<128x512xf32>, vector<8x512xf32> -> vector<8x512xf32>
    %254 = arith.addf %252, %253 : vector<8x512xf32>
    %255 = vector.extract_strided_slice %254 {offsets = [0, 0], sizes = [8, 128], strides = [1, 1]} : vector<8x512xf32> to vector<8x128xf32>
    %256 = arith.negf %255 : vector<8x128xf32>
    %257 = math.exp %256 : vector<8x128xf32>
    %cst_74 = arith.constant 1.000000e+00 : f32
    %258 = vector.broadcast %cst_74 : f32 to vector<8x128xf32>
    %259 = arith.addf %258, %257 : vector<8x128xf32>
    %260 = arith.divf %258, %259 : vector<8x128xf32>
    %261 = vector.extract_strided_slice %254 {offsets = [0, 128], sizes = [8, 128], strides = [1, 1]} : vector<8x512xf32> to vector<8x128xf32>
    %262 = arith.negf %261 : vector<8x128xf32>
    %263 = math.exp %262 : vector<8x128xf32>
    %cst_75 = arith.constant 1.000000e+00 : f32
    %264 = vector.broadcast %cst_75 : f32 to vector<8x128xf32>
    %265 = arith.addf %264, %263 : vector<8x128xf32>
    %266 = arith.divf %264, %265 : vector<8x128xf32>
    %267 = vector.extract_strided_slice %254 {offsets = [0, 256], sizes = [8, 128], strides = [1, 1]} : vector<8x512xf32> to vector<8x128xf32>
    %268 = math.tanh %267 : vector<8x128xf32>
    %269 = vector.extract_strided_slice %254 {offsets = [0, 384], sizes = [8, 128], strides = [1, 1]} : vector<8x512xf32> to vector<8x128xf32>
    %270 = arith.negf %269 : vector<8x128xf32>
    %271 = math.exp %270 : vector<8x128xf32>
    %cst_76 = arith.constant 1.000000e+00 : f32
    %272 = vector.broadcast %cst_76 : f32 to vector<8x128xf32>
    %273 = arith.addf %272, %271 : vector<8x128xf32>
    %274 = arith.divf %272, %273 : vector<8x128xf32>
    %275 = arith.mulf %266, %243 : vector<8x128xf32>
    %276 = arith.mulf %260, %268 : vector<8x128xf32>
    %277 = arith.addf %275, %276 : vector<8x128xf32>
    %278 = math.tanh %277 : vector<8x128xf32>
    %279 = arith.mulf %274, %278 : vector<8x128xf32>
    %280 = arith.index_cast %c7_i32 : i32 to index
    %c0_77 = arith.constant 0 : index
    %c0_78 = arith.constant 0 : index
    %281 = vector.load %arg13[%280, %c0_77, %c0_78] : memref<8x8x128xf32, #tpu.memory_space<vmem>>, vector<1x8x128xf32>
    %282 = vector.shape_cast %281 : vector<1x8x128xf32> to vector<8x128xf32>
    %283 = vector.shape_cast %279 : vector<8x128xf32> to vector<1x8x128xf32>
    tpu.vector_store %arg13[%280, %c0_77, %c0_78], %283 {strides = array<i32>} : memref<8x8x128xf32, #tpu.memory_space<vmem>>, vector<1x8x128xf32>,
    %c8_i32 = arith.constant 8 : i32
    %c0_79 = arith.constant 0 : index
    %c0_80 = arith.constant 0 : index
    %284 = vector.load %arg10[%c0_79, %c0_80] : memref<8x128xf32, #tpu.memory_space<vmem>>, vector<8x128xf32>
    tpu.vector_store %arg10[%c0_79, %c0_80], %279 {strides = array<i32>} : memref<8x128xf32, #tpu.memory_space<vmem>>, vector<8x128xf32>,
    %c0_81 = arith.constant 0 : index
    %c0_82 = arith.constant 0 : index
    %285 = vector.load %arg11[%c0_81, %c0_82] : memref<8x128xf32, #tpu.memory_space<vmem>>, vector<8x128xf32>
    tpu.vector_store %arg11[%c0_81, %c0_82], %277 {strides = array<i32>} : memref<8x128xf32, #tpu.memory_space<vmem>>, vector<8x128xf32>,
    %c0_83 = arith.constant 0 : index
    %c0_84 = arith.constant 0 : index
    %c0_85 = arith.constant 0 : index
    %286 = vector.load %arg13[%c0_83, %c0_84, %c0_85] : memref<8x8x128xf32, #tpu.memory_space<vmem>>, vector<8x8x128xf32>
    %287 = vector.shape_cast %286 : vector<8x8x128xf32> to vector<64x128xf32>
    %c0_86 = arith.constant 0 : index
    %c0_87 = arith.constant 0 : index
    %288 = vector.load %arg7[%c0_86, %c0_87] : memref<128x128xf32, #tpu.memory_space<vmem>>, vector<128x128xf32>
    %cst_88 = arith.constant dense<0.000000e+00> : vector<64x128xf32>
    %289 = tpu.matmul %287, %288, %cst_88 {dimension_numbers = #tpu.dot_dimension_numbers<[1], [0], [0], [1], [0, 0, 1, 1], [], []>} : vector<64x128xf32>, vector<128x128xf32>, vector<64x128xf32> -> vector<64x128xf32>
    %c0_89 = arith.constant 0 : index
    %c0_90 = arith.constant 0 : index
    %290 = vector.load %arg8[%c0_89, %c0_90] : memref<1x128xf32, #tpu.memory_space<vmem>>, vector<1x128xf32>
    %291 = vector.broadcast %290 : vector<1x128xf32> to vector<64x128xf32>
    %292 = arith.addf %289, %291 : vector<64x128xf32>
    %293 = vector.shape_cast %292 : vector<64x128xf32> to vector<8x8x128xf32>
    %c0_91 = arith.constant 0 : index
    %c0_92 = arith.constant 0 : index
    %c0_93 = arith.constant 0 : index
    %294 = vector.load %arg9[%c0_91, %c0_92, %c0_93] : memref<8x8x128xf32, #tpu.memory_space<vmem>>, vector<8x8x128xf32>
    tpu.vector_store %arg9[%c0_91, %c0_92, %c0_93], %293 {strides = array<i32>} : memref<8x8x128xf32, #tpu.memory_space<vmem>>, vector<8x8x128xf32>,
    return
  }
  func.func @transform_0(%arg0: i32) -> (i32, i32, i32) {
    %c0_i32 = arith.constant 0 : i32
    %c0_i32_0 = arith.constant 0 : i32
    %c0_i32_1 = arith.constant 0 : i32
    %c0_i32_2 = arith.constant 0 : i32
    return %c0_i32, %c0_i32_0, %c0_i32_1 : i32, i32, i32
  }
  func.func @transform_1(%arg0: i32) -> (i32, i32) {
    %c0_i32 = arith.constant 0 : i32
    %c0_i32_0 = arith.constant 0 : i32
    %c0_i32_1 = arith.constant 0 : i32
    return %c0_i32, %c0_i32_0 : i32, i32
  }
  func.func @transform_2(%arg0: i32) -> (i32, i32) {
    %c0_i32 = arith.constant 0 : i32
    %c0_i32_0 = arith.constant 0 : i32
    %c0_i32_1 = arith.constant 0 : i32
    return %c0_i32, %c0_i32_0 : i32, i32
  }
  func.func @transform_3(%arg0: i32) -> (i32, i32) {
    %c0_i32 = arith.constant 0 : i32
    %c0_i32_0 = arith.constant 0 : i32
    %c0_i32_1 = arith.constant 0 : i32
    return %c0_i32, %c0_i32_0 : i32, i32
  }
  func.func @transform_4(%arg0: i32) -> (i32, i32) {
    %c0_i32 = arith.constant 0 : i32
    %c0_i32_0 = arith.constant 0 : i32
    %c0_i32_1 = arith.constant 0 : i32
    return %c0_i32, %c0_i32_0 : i32, i32
  }
  func.func @transform_5(%arg0: i32) -> (i32, i32) {
    %c0_i32 = arith.constant 0 : i32
    %c0_i32_0 = arith.constant 0 : i32
    %c0_i32_1 = arith.constant 0 : i32
    return %c0_i32, %c0_i32_0 : i32, i32
  }
  func.func @transform_6(%arg0: i32) -> (i32, i32) {
    %c0_i32 = arith.constant 0 : i32
    %c0_i32_0 = arith.constant 0 : i32
    %c0_i32_1 = arith.constant 0 : i32
    return %c0_i32, %c0_i32_0 : i32, i32
  }
  func.func @transform_7(%arg0: i32) -> (i32, i32) {
    %c0_i32 = arith.constant 0 : i32
    %c0_i32_0 = arith.constant 0 : i32
    %c0_i32_1 = arith.constant 0 : i32
    return %c0_i32, %c0_i32_0 : i32, i32
  }
  func.func @transform_8(%arg0: i32) -> (i32, i32, i32) {
    %c0_i32 = arith.constant 0 : i32
    %c0_i32_0 = arith.constant 0 : i32
    %c0_i32_1 = arith.constant 0 : i32
    %c0_i32_2 = arith.constant 0 : i32
    return %c0_i32, %c0_i32_0, %c0_i32_1 : i32, i32, i32
  }
  func.func @transform_9(%arg0: i32) -> (i32, i32) {
    %c0_i32 = arith.constant 0 : i32
    %c0_i32_0 = arith.constant 0 : i32
    %c0_i32_1 = arith.constant 0 : i32
    return %c0_i32, %c0_i32_0 : i32, i32
  }
  func.func @transform_10(%arg0: i32) -> (i32, i32) {
    %c0_i32 = arith.constant 0 : i32
    %c0_i32_0 = arith.constant 0 : i32
    %c0_i32_1 = arith.constant 0 : i32
    return %c0_i32, %c0_i32_0 : i32, i32
  }
}

</mosaic_0001>

<llo_original>
// kernel: decoder_forward.1
$region0: #{decoder_forward.1}
  #allocation0 [shape = 'u32[]', space=smem, size = 0x4, offset = 0x4, fixed_abs, tag = 'smem constant byte address 0x4 - core index']
  #allocation1 [shape = 'u32[144,128]{1,0:T(1,128)}', space=vmem, size = 0x12000, scoped, tag = 'internal scratch']
  #allocation2 [shape = 'f32[8,8,512]{2,1,0:T(8,128)}', space=vmem, size = 0x20000, scoped, tag = 'scratch operand']
  #allocation3 [shape = 'f32[8,8,128]{2,1,0:T(8,128)}', space=vmem, size = 0x8000, scoped, tag = 'scratch operand']
  %s0 = inlined_call_operand.vmem [shape: f32[8,8,128], index: 0, kind: input, shape index: {}]
  %s1 = inlined_call_operand.vmem [shape: f32[8,128], index: 1, kind: input, shape index: {}]
  %s2 = inlined_call_operand.vmem [shape: f32[8,128], index: 2, kind: input, shape index: {}]
  %s3 = inlined_call_operand.vmem [shape: f32[128,512], index: 3, kind: input, shape index: {}]
  %s4 = inlined_call_operand.vmem [shape: f32[128,512], index: 4, kind: input, shape index: {}]
  %s5 = inlined_call_operand.vmem [shape: f32[1,512], index: 5, kind: input, shape index: {}]
  %s6 = inlined_call_operand.vmem [shape: f32[128,128], index: 6, kind: input, shape index: {}]
  %s7 = inlined_call_operand.vmem [shape: f32[1,128], index: 7, kind: input, shape index: {}]
  %s8 = inlined_call_operand.vmem [shape: f32[8,8,128], index: 8, kind: output, shape index: {0}]
  %s9 = inlined_call_operand.vmem [shape: f32[8,128], index: 9, kind: output, shape index: {1}]
  %s10 = inlined_call_operand.vmem [shape: f32[8,128], index: 10, kind: output, shape index: {2}]
  %11 = xla_tuple %s8, %s9, %s10
  %s12 = sld [smem:[#allocation0]]
  $region58: #{decoder_forward.1} parent=0
    _
  %s14 = ssub.s32 1, %s12
  %s15 = scalar_select 0, %s14, %s12
  // Predicated region
  $region2: #{decoder_forward.1} parent=0 // pred_check
    _
  $region3: #{decoder_forward.1} parent=0 // pred_check_branch
    %17 = sbr.rel (0) target = $region5
  $region4: #{decoder_forward.1} parent=0 // pred_region
    _
  $region5: #{decoder_forward.1} parent=0 // pred_fallthru
    _
  // Predicated region
  $region6: #{decoder_forward.1} parent=0 // pred_check
    _
  $region7: #{decoder_forward.1} parent=0 // pred_check_branch
    %19 = sbr.rel (0) target = $region9
  $region8: #{decoder_forward.1} parent=0 // pred_region
    _
  $region9: #{decoder_forward.1} parent=0 // pred_fallthru
    _
  // Predicated region
  $region10: #{decoder_forward.1} parent=0 // pred_check
    _
  $region11: #{decoder_forward.1} parent=0 // pred_check_branch
    %21 = sbr.rel (0) target = $region13
  $region12: #{decoder_forward.1} parent=0 // pred_region
    _
  $region13: #{decoder_forward.1} parent=0 // pred_fallthru
    _
  // Predicated region
  $region14: #{decoder_forward.1} parent=0 // pred_check
    _
  $region15: #{decoder_forward.1} parent=0 // pred_check_branch
    %23 = sbr.rel (0) target = $region17
  $region16: #{decoder_forward.1} parent=0 // pred_region
    _
  $region17: #{decoder_forward.1} parent=0 // pred_fallthru
    _
  // Predicated region
  $region18: #{decoder_forward.1} parent=0 // pred_check
    _
  $region19: #{decoder_forward.1} parent=0 // pred_check_branch
    %25 = sbr.rel (0) target = $region21
  $region20: #{decoder_forward.1} parent=0 // pred_region
    _
  $region21: #{decoder_forward.1} parent=0 // pred_fallthru
    _
  // Predicated region
  $region22: #{decoder_forward.1} parent=0 // pred_check
    _
  $region23: #{decoder_forward.1} parent=0 // pred_check_branch
    %27 = sbr.rel (0) target = $region25
  $region24: #{decoder_forward.1} parent=0 // pred_region
    _
  $region25: #{decoder_forward.1} parent=0 // pred_fallthru
    _
  // Predicated region
  $region26: #{decoder_forward.1} parent=0 // pred_check
    _
  $region27: #{decoder_forward.1} parent=0 // pred_check_branch
    %29 = sbr.rel (0) target = $region29
  $region28: #{decoder_forward.1} parent=0 // pred_region
    _
  $region29: #{decoder_forward.1} parent=0 // pred_fallthru
    _
  // Predicated region
  $region30: #{decoder_forward.1} parent=0 // pred_check
    _
  $region31: #{decoder_forward.1} parent=0 // pred_check_branch
    %31 = sbr.rel (0) target = $region33
  $region32: #{decoder_forward.1} parent=0 // pred_region
    _
  $region33: #{decoder_forward.1} parent=0 // pred_fallthru
    _
  %v32 = vld [vmem:[%s0] sm:$0xff]
  %v33 = vld [vmem:[%s0 + $0x8] sm:$0xff]
  %v34 = vld [vmem:[%s0 + $0x10] sm:$0xff]
  %v35 = vld [vmem:[%s0 + $0x18] sm:$0xff]
  %v36 = vld [vmem:[%s0 + $0x20] sm:$0xff]
  %v37 = vld [vmem:[%s0 + $0x28] sm:$0xff]
  %v38 = vld [vmem:[%s0 + $0x30] sm:$0xff]
  %v39 = vld [vmem:[%s0 + $0x38] sm:$0xff]
  %v40 = vld [vmem:[%s3] sm:$0xff]
  %v41 = vld [vmem:[%s3 + $0x8] sm:$0xff]
  %v42 = vld [vmem:[%s3 + $0x10] sm:$0xff]
  %v43 = vld [vmem:[%s3 + $0x18] sm:$0xff]
  %v44 = vld [vmem:[%s3 + $0x20] sm:$0xff]
  %v45 = vld [vmem:[%s3 + $0x28] sm:$0xff]
  %v46 = vld [vmem:[%s3 + $0x30] sm:$0xff]
  %v47 = vld [vmem:[%s3 + $0x38] sm:$0xff]
  %v48 = vld [vmem:[%s3 + $0x40] sm:$0xff]
  %v49 = vld [vmem:[%s3 + $0x48] sm:$0xff]
  %v50 = vld [vmem:[%s3 + $0x50] sm:$0xff]
  %v51 = vld [vmem:[%s3 + $0x58] sm:$0xff]
  %v52 = vld [vmem:[%s3 + $0x60] sm:$0xff]
  %v53 = vld [vmem:[%s3 + $0x68] sm:$0xff]
  %v54 = vld [vmem:[%s3 + $0x70] sm:$0xff]
  %v55 = vld [vmem:[%s3 + $0x78] sm:$0xff]
  %v56 = vld [vmem:[%s3 + $0x80] sm:$0xff]
  %v57 = vld [vmem:[%s3 + $0x88] sm:$0xff]
  %v58 = vld [vmem:[%s3 + $0x90] sm:$0xff]
  %v59 = vld [vmem:[%s3 + $0x98] sm:$0xff]
  %v60 = vld [vmem:[%s3 + $0xa0] sm:$0xff]
  %v61 = vld [vmem:[%s3 + $0xa8] sm:$0xff]
  %v62 = vld [vmem:[%s3 + $0xb0] sm:$0xff]
  %v63 = vld [vmem:[%s3 + $0xb8] sm:$0xff]
  %v64 = vld [vmem:[%s3 + $0xc0] sm:$0xff]
  %v65 = vld [vmem:[%s3 + $0xc8] sm:$0xff]
  %v66 = vld [vmem:[%s3 + $0xd0] sm:$0xff]
  %v67 = vld [vmem:[%s3 + $0xd8] sm:$0xff]
  %v68 = vld [vmem:[%s3 + $0xe0] sm:$0xff]
  %v69 = vld [vmem:[%s3 + $0xe8] sm:$0xff]
  %v70 = vld [vmem:[%s3 + $0xf0] sm:$0xff]
  %v71 = vld [vmem:[%s3 + $0xf8] sm:$0xff]
  %v72 = vld [vmem:[%s3 + $0x100] sm:$0xff]
  %v73 = vld [vmem:[%s3 + $0x108] sm:$0xff]
  %v74 = vld [vmem:[%s3 + $0x110] sm:$0xff]
  %v75 = vld [vmem:[%s3 + $0x118] sm:$0xff]
  %v76 = vld [vmem:[%s3 + $0x120] sm:$0xff]
  %v77 = vld [vmem:[%s3 + $0x128] sm:$0xff]
  %v78 = vld [vmem:[%s3 + $0x130] sm:$0xff]
  %v79 = vld [vmem:[%s3 + $0x138] sm:$0xff]
  %v80 = vld [vmem:[%s3 + $0x140] sm:$0xff]
  %v81 = vld [vmem:[%s3 + $0x148] sm:$0xff]
  %v82 = vld [vmem:[%s3 + $0x150] sm:$0xff]
  %v83 = vld [vmem:[%s3 + $0x158] sm:$0xff]
  %v84 = vld [vmem:[%s3 + $0x160] sm:$0xff]
  %v85 = vld [vmem:[%s3 + $0x168] sm:$0xff]
  %v86 = vld [vmem:[%s3 + $0x170] sm:$0xff]
  %v87 = vld [vmem:[%s3 + $0x178] sm:$0xff]
  %v88 = vld [vmem:[%s3 + $0x180] sm:$0xff]
  %v89 = vld [vmem:[%s3 + $0x188] sm:$0xff]
  %v90 = vld [vmem:[%s3 + $0x190] sm:$0xff]
  %v91 = vld [vmem:[%s3 + $0x198] sm:$0xff]
  %v92 = vld [vmem:[%s3 + $0x1a0] sm:$0xff]
  %v93 = vld [vmem:[%s3 + $0x1a8] sm:$0xff]
  %v94 = vld [vmem:[%s3 + $0x1b0] sm:$0xff]
  %v95 = vld [vmem:[%s3 + $0x1b8] sm:$0xff]
  %v96 = vld [vmem:[%s3 + $0x1c0] sm:$0xff]
  %v97 = vld [vmem:[%s3 + $0x1c8] sm:$0xff]
  %v98 = vld [vmem:[%s3 + $0x1d0] sm:$0xff]
  %v99 = vld [vmem:[%s3 + $0x1d8] sm:$0xff]
  %v100 = vld [vmem:[%s3 + $0x1e0] sm:$0xff]
  %v101 = vld [vmem:[%s3 + $0x1e8] sm:$0xff]
  %v102 = vld [vmem:[%s3 + $0x1f0] sm:$0xff]
  %v103 = vld [vmem:[%s3 + $0x1f8] sm:$0xff]
  %v104 = vld [vmem:[%s5] sm:$0xf]
  %v106 = vlaneseq
  %v107 = vshrl.u32 %v106, 7
  %v108 = vsub.s32 0, %v107
  %v109 = vrot.slane %v104, %v108
  %v110 = vlaneseq
  %v111 = vshrl.u32 %v110, 7
  %v112 = vsub.s32 1, %v111
  %v113 = vrot.slane %v104, %v112
  %v114 = vlaneseq
  %v115 = vshrl.u32 %v114, 7
  %v116 = vsub.s32 2, %v115
  %v117 = vrot.slane %v104, %v116
  %v118 = vlaneseq
  %v119 = vshrl.u32 %v118, 7
  %v120 = vsub.s32 3, %v119
  %v121 = vrot.slane %v104, %v120
  %126 = vmatprep.subr.mxu0 %v41
  %127 = vmatpush1.msra.mxu0 %v40
  %128 = vmatprep.subr.mxu0 %v45
  %129 = vmatpush1.msra.mxu0 %v44
  %130 = vmatprep.subr.mxu0 %v49
  %131 = vmatpush1.msra.mxu0 %v48
  %132 = vmatprep.subr.mxu0 %v53
  %133 = vmatpush1.msra.mxu0 %v52
  %134 = vmatprep.subr.mxu0 %v57
  %135 = vmatpush1.msra.mxu0 %v56
  %136 = vmatprep.subr.mxu0 %v61
  %137 = vmatpush1.msra.mxu0 %v60
  %138 = vmatprep.subr.mxu0 %v65
  %139 = vmatpush1.msra.mxu0 %v64
  %140 = vmatprep.subr.mxu0 %v69
  %141 = vmatpush1.msra.mxu0 %v68
  %142 = vmatprep.subr.mxu0 %v73
  %143 = vmatpush1.msra.mxu0 %v72
  %144 = vmatprep.subr.mxu0 %v77
  %145 = vmatpush1.msra.mxu0 %v76
  %146 = vmatprep.subr.mxu0 %v81
  %147 = vmatpush1.msra.mxu0 %v80
  %148 = vmatprep.subr.mxu0 %v85
  %149 = vmatpush1.msra.mxu0 %v84
  %150 = vmatprep.subr.mxu0 %v89
  %151 = vmatpush1.msra.mxu0 %v88
  %152 = vmatprep.subr.mxu0 %v93
  %153 = vmatpush1.msra.mxu0 %v92
  %154 = vmatprep.subr.mxu0 %v97
  %155 = vmatpush1.msra.mxu0 %v96
  %156 = vmatprep.subr.mxu0 %v101
  %157 = vmatpush1.msra.mxu0 %v100
  %158 = vmatprep.subr.mxu0 0.0
  %159 = vmatpush1.msra.mxu0 0.0
  %160 = vmatprep.subr.mxu0 0.0
  %161 = vmatpush1.msra.mxu0 0.0
  %162 = vmatprep.subr.mxu0 0.0
  %163 = vmatpush1.msra.mxu0 0.0
  %164 = vmatprep.subr.mxu0 0.0
  %165 = vmatpush1.msra.mxu0 0.0
  %166 = vmatprep.subr.mxu0 0.0
  %167 = vmatpush1.msra.mxu0 0.0
  %168 = vmatprep.subr.mxu0 0.0
  %169 = vmatpush1.msra.mxu0 0.0
  %170 = vmatprep.subr.mxu0 0.0
  %171 = vmatpush1.msra.mxu0 0.0
  %172 = vmatprep.subr.mxu0 0.0
  %173 = vmatpush1.msra.mxu0 0.0
  %174 = vmatprep.subr.mxu0 0.0
  %175 = vmatpush1.msra.mxu0 0.0
  %176 = vmatprep.subr.mxu0 0.0
  %177 = vmatpush1.msra.mxu0 0.0
  %178 = vmatprep.subr.mxu0 0.0
  %179 = vmatpush1.msra.mxu0 0.0
  %180 = vmatprep.subr.mxu0 0.0
  %181 = vmatpush1.msra.mxu0 0.0
  %182 = vmatprep.subr.mxu0 0.0
  %183 = vmatpush1.msra.mxu0 0.0
  %184 = vmatprep.subr.mxu0 0.0
  %185 = vmatpush1.msra.mxu0 0.0
  %186 = vmatprep.subr.mxu0 0.0
  %187 = vmatpush1.msra.mxu0 0.0
  %188 = vmatprep.subr.mxu0 0.0
  %189 = vmatpush1.msra.mxu0 0.0
  %190 = vmatprep.mubr.f32.mxu0 0.0
  %191 = vmatmul.mubr.f32.gmra.mrb[0].mxu0 %v32
  %v192 = vpop.f32.mrb[0].mxu0
  %v193 = vadd.f32 %v109, %v192
  %v194 = vpop.f32.mrb[0].mxu0
  %v195 = vadd.f32 %v113, %v194
  %196 = vmatprep.mubr.f32.mxu0 0.0
  %197 = vmatmul.mubr.f32.gmra.mrb[0].mxu0 %v33
  %v198 = vpop.f32.mrb[0].mxu0
  %v199 = vadd.f32 %v109, %v198
  %v200 = vpop.f32.mrb[0].mxu0
  %v201 = vadd.f32 %v113, %v200
  %202 = vmatprep.mubr.f32.mxu0 0.0
  %203 = vmatmul.mubr.f32.gmra.mrb[0].mxu0 %v34
  %v204 = vpop.f32.mrb[0].mxu0
  %v205 = vadd.f32 %v109, %v204
  %v206 = vpop.f32.mrb[0].mxu0
  %v207 = vadd.f32 %v113, %v206
  %208 = vmatprep.mubr.f32.mxu0 0.0
  %209 = vmatmul.mubr.f32.gmra.mrb[0].mxu0 %v35
  %v210 = vpop.f32.mrb[0].mxu0
  %v211 = vadd.f32 %v109, %v210
  %v212 = vpop.f32.mrb[0].mxu0
  %v213 = vadd.f32 %v113, %v212
  %214 = vmatprep.mubr.f32.mxu0 0.0
  %215 = vmatmul.mubr.f32.gmra.mrb[0].mxu0 %v36
  %v216 = vpop.f32.mrb[0].mxu0
  %v217 = vadd.f32 %v109, %v216
  %v218 = vpop.f32.mrb[0].mxu0
  %v219 = vadd.f32 %v113, %v218
  %220 = vmatprep.mubr.f32.mxu0 0.0
  %221 = vmatmul.mubr.f32.gmra.mrb[0].mxu0 %v37
  %v222 = vpop.f32.mrb[0].mxu0
  %v223 = vadd.f32 %v109, %v222
  %v224 = vpop.f32.mrb[0].mxu0
  %v225 = vadd.f32 %v113, %v224
  %226 = vmatprep.mubr.f32.mxu0 0.0
  %227 = vmatmul.mubr.f32.gmra.mrb[0].mxu0 %v38
  %v228 = vpop.f32.mrb[0].mxu0
  %v229 = vadd.f32 %v109, %v228
  %v230 = vpop.f32.mrb[0].mxu0
  %v231 = vadd.f32 %v113, %v230
  %232 = vmatprep.mubr.f32.mxu0 0.0
  %233 = vmatmul.mubr.f32.gmra.mrb[0].mxu0 %v39
  %v234 = vpop.f32.mrb[0].mxu0
  %v235 = vadd.f32 %v109, %v234
  %v236 = vpop.f32.mrb[0].mxu0
  %v237 = vadd.f32 %v113, %v236
  %238 = vdwg.mxu0
  %239 = vmatprep.subr.mxu0 %v43
  %240 = vmatpush1.msra.mxu0 %v42
  %241 = vmatprep.subr.mxu0 %v47
  %242 = vmatpush1.msra.mxu0 %v46
  %243 = vmatprep.subr.mxu0 %v51
  %244 = vmatpush1.msra.mxu0 %v50
  %245 = vmatprep.subr.mxu0 %v55
  %246 = vmatpush1.msra.mxu0 %v54
  %247 = vmatprep.subr.mxu0 %v59
  %248 = vmatpush1.msra.mxu0 %v58
  %249 = vmatprep.subr.mxu0 %v63
  %250 = vmatpush1.msra.mxu0 %v62
  %251 = vmatprep.subr.mxu0 %v67
  %252 = vmatpush1.msra.mxu0 %v66
  %253 = vmatprep.subr.mxu0 %v71
  %254 = vmatpush1.msra.mxu0 %v70
  %255 = vmatprep.subr.mxu0 %v75
  %256 = vmatpush1.msra.mxu0 %v74
  %257 = vmatprep.subr.mxu0 %v79
  %258 = vmatpush1.msra.mxu0 %v78
  %259 = vmatprep.subr.mxu0 %v83
  %260 = vmatpush1.msra.mxu0 %v82
  %261 = vmatprep.subr.mxu0 %v87
  %262 = vmatpush1.msra.mxu0 %v86
  %263 = vmatprep.subr.mxu0 %v91
  %264 = vmatpush1.msra.mxu0 %v90
  %265 = vmatprep.subr.mxu0 %v95
  %266 = vmatpush1.msra.mxu0 %v94
  %267 = vmatprep.subr.mxu0 %v99
  %268 = vmatpush1.msra.mxu0 %v98
  %269 = vmatprep.subr.mxu0 %v103
  %270 = vmatpush1.msra.mxu0 %v102
  %271 = vmatprep.subr.mxu0 0.0
  %272 = vmatpush1.msra.mxu0 0.0
  %273 = vmatprep.subr.mxu0 0.0
  %274 = vmatpush1.msra.mxu0 0.0
  %275 = vmatprep.subr.mxu0 0.0
  %276 = vmatpush1.msra.mxu0 0.0
  %277 = vmatprep.subr.mxu0 0.0
  %278 = vmatpush1.msra.mxu0 0.0
  %279 = vmatprep.subr.mxu0 0.0
  %280 = vmatpush1.msra.mxu0 0.0
  %281 = vmatprep.subr.mxu0 0.0
  %282 = vmatpush1.msra.mxu0 0.0
  %283 = vmatprep.subr.mxu0 0.0
  %284 = vmatpush1.msra.mxu0 0.0
  %285 = vmatprep.subr.mxu0 0.0
  %286 = vmatpush1.msra.mxu0 0.0
  %287 = vmatprep.subr.mxu0 0.0
  %288 = vmatpush1.msra.mxu0 0.0
  %289 = vmatprep.subr.mxu0 0.0
  %290 = vmatpush1.msra.mxu0 0.0
  %291 = vmatprep.subr.mxu0 0.0
  %292 = vmatpush1.msra.mxu0 0.0
  %293 = vmatprep.subr.mxu0 0.0
  %294 = vmatpush1.msra.mxu0 0.0
  %295 = vmatprep.subr.mxu0 0.0
  %296 = vmatpush1.msra.mxu0 0.0
  %297 = vmatprep.subr.mxu0 0.0
  %298 = vmatpush1.msra.mxu0 0.0
  %299 = vmatprep.subr.mxu0 0.0
  %300 = vmatpush1.msra.mxu0 0.0
  %301 = vmatprep.subr.mxu0 0.0
  %302 = vmatpush1.msra.mxu0 0.0
  %303 = vmatprep.mubr.f32.mxu0 0.0
  %304 = vmatmul.mubr.f32.gmra.mrb[0].mxu0 %v32
  %v305 = vpop.f32.mrb[0].mxu0
  %v306 = vadd.f32 %v117, %v305
  %v307 = vpop.f32.mrb[0].mxu0
  %v308 = vadd.f32 %v121, %v307
  %309 = vmatprep.mubr.f32.mxu0 0.0
  %310 = vmatmul.mubr.f32.gmra.mrb[0].mxu0 %v33
  %v311 = vpop.f32.mrb[0].mxu0
  %v312 = vadd.f32 %v117, %v311
  %v313 = vpop.f32.mrb[0].mxu0
  %v314 = vadd.f32 %v121, %v313
  %315 = vmatprep.mubr.f32.mxu0 0.0
  %316 = vmatmul.mubr.f32.gmra.mrb[0].mxu0 %v34
  %v317 = vpop.f32.mrb[0].mxu0
  %v318 = vadd.f32 %v117, %v317
  %v319 = vpop.f32.mrb[0].mxu0
  %v320 = vadd.f32 %v121, %v319
  %321 = vmatprep.mubr.f32.mxu0 0.0
  %322 = vmatmul.mubr.f32.gmra.mrb[0].mxu0 %v35
  %v323 = vpop.f32.mrb[0].mxu0
  %v324 = vadd.f32 %v117, %v323
  %v325 = vpop.f32.mrb[0].mxu0
  %v326 = vadd.f32 %v121, %v325
  %327 = vmatprep.mubr.f32.mxu0 0.0
  %328 = vmatmul.mubr.f32.gmra.mrb[0].mxu0 %v36
  %v329 = vpop.f32.mrb[0].mxu0
  %v330 = vadd.f32 %v117, %v329
  %v331 = vpop.f32.mrb[0].mxu0
  %v332 = vadd.f32 %v121, %v331
  %333 = vmatprep.mubr.f32.mxu0 0.0
  %334 = vmatmul.mubr.f32.gmra.mrb[0].mxu0 %v37
  %v335 = vpop.f32.mrb[0].mxu0
  %v336 = vadd.f32 %v117, %v335
  %v337 = vpop.f32.mrb[0].mxu0
  %v338 = vadd.f32 %v121, %v337
  %339 = vmatprep.mubr.f32.mxu0 0.0
  %340 = vmatmul.mubr.f32.gmra.mrb[0].mxu0 %v38
  %v341 = vpop.f32.mrb[0].mxu0
  %v342 = vadd.f32 %v117, %v341
  %v343 = vpop.f32.mrb[0].mxu0
  %v344 = vadd.f32 %v121, %v343
  %345 = vmatprep.mubr.f32.mxu0 0.0
  %346 = vmatmul.mubr.f32.gmra.mrb[0].mxu0 %v39
  %v347 = vpop.f32.mrb[0].mxu0
  %v348 = vadd.f32 %v117, %v347
  %v349 = vpop.f32.mrb[0].mxu0
  %v350 = vadd.f32 %v121, %v349
  %351 = vdwg.mxu0
  %352 = vst [vmem:[#allocation2] sm:$0xff] %v193
  %353 = vst [vmem:[#allocation2 + $0x8] sm:$0xff] %v195
  %354 = vst [vmem:[#allocation2 + $0x10] sm:$0xff] %v306
  %355 = vst [vmem:[#allocation2 + $0x18] sm:$0xff] %v308
  %356 = vst [vmem:[#allocation2 + $0x20] sm:$0xff] %v199
  %357 = vst [vmem:[#allocation2 + $0x28] sm:$0xff] %v201
  %358 = vst [vmem:[#allocation2 + $0x30] sm:$0xff] %v312
  %359 = vst [vmem:[#allocation2 + $0x38] sm:$0xff] %v314
  %360 = vst [vmem:[#allocation2 + $0x40] sm:$0xff] %v205
  %361 = vst [vmem:[#allocation2 + $0x48] sm:$0xff] %v207
  %362 = vst [vmem:[#allocation2 + $0x50] sm:$0xff] %v318
  %363 = vst [vmem:[#allocation2 + $0x58] sm:$0xff] %v320
  %364 = vst [vmem:[#allocation2 + $0x60] sm:$0xff] %v211
  %365 = vst [vmem:[#allocation2 + $0x68] sm:$0xff] %v213
  %366 = vst [vmem:[#allocation2 + $0x70] sm:$0xff] %v324
  %367 = vst [vmem:[#allocation2 + $0x78] sm:$0xff] %v326
  %368 = vst [vmem:[#allocation2 + $0x80] sm:$0xff] %v217
  %369 = vst [vmem:[#allocation2 + $0x88] sm:$0xff] %v219
  %370 = vst [vmem:[#allocation2 + $0x90] sm:$0xff] %v330
  %371 = vst [vmem:[#allocation2 + $0x98] sm:$0xff] %v332
  %372 = vst [vmem:[#allocation2 + $0xa0] sm:$0xff] %v223
  %373 = vst [vmem:[#allocation2 + $0xa8] sm:$0xff] %v225
  %374 = vst [vmem:[#allocation2 + $0xb0] sm:$0xff] %v336
  %375 = vst [vmem:[#allocation2 + $0xb8] sm:$0xff] %v338
  %376 = vst [vmem:[#allocation2 + $0xc0] sm:$0xff] %v229
  %377 = vst [vmem:[#allocation2 + $0xc8] sm:$0xff] %v231
  %378 = vst [vmem:[#allocation2 + $0xd0] sm:$0xff] %v342
  %379 = vst [vmem:[#allocation2 + $0xd8] sm:$0xff] %v344
  %380 = vst [vmem:[#allocation2 + $0xe0] sm:$0xff] %v235
  %381 = vst [vmem:[#allocation2 + $0xe8] sm:$0xff] %v237
  %382 = vst [vmem:[#allocation2 + $0xf0] sm:$0xff] %v348
  %383 = vst [vmem:[#allocation2 + $0xf8] sm:$0xff] %v350
  %v384 = vld [vmem:[%s4] sm:$0xff]
  %v385 = vld [vmem:[%s4 + $0x8] sm:$0xff]
  %v386 = vld [vmem:[%s4 + $0x10] sm:$0xff]
  %v387 = vld [vmem:[%s4 + $0x18] sm:$0xff]
  %v388 = vld [vmem:[%s4 + $0x20] sm:$0xff]
  %v389 = vld [vmem:[%s4 + $0x28] sm:$0xff]
  %v390 = vld [vmem:[%s4 + $0x30] sm:$0xff]
  %v391 = vld [vmem:[%s4 + $0x38] sm:$0xff]
  %v392 = vld [vmem:[%s4 + $0x40] sm:$0xff]
  %v393 = vld [vmem:[%s4 + $0x48] sm:$0xff]
  %v394 = vld [vmem:[%s4 + $0x50] sm:$0xff]
  %v395 = vld [vmem:[%s4 + $0x58] sm:$0xff]
  %v396 = vld [vmem:[%s4 + $0x60] sm:$0xff]
  %v397 = vld [vmem:[%s4 + $0x68] sm:$0xff]
  %v398 = vld [vmem:[%s4 + $0x70] sm:$0xff]
  %v399 = vld [vmem:[%s4 + $0x78] sm:$0xff]
  %v400 = vld [vmem:[%s4 + $0x80] sm:$0xff]
  %v401 = vld [vmem:[%s4 + $0x88] sm:$0xff]
  %v402 = vld [vmem:[%s4 + $0x90] sm:$0xff]
  %v403 = vld [vmem:[%s4 + $0x98] sm:$0xff]
  %v404 = vld [vmem:[%s4 + $0xa0] sm:$0xff]
  %v405 = vld [vmem:[%s4 + $0xa8] sm:$0xff]
  %v406 = vld [vmem:[%s4 + $0xb0] sm:$0xff]
  %v407 = vld [vmem:[%s4 + $0xb8] sm:$0xff]
  %v408 = vld [vmem:[%s4 + $0xc0] sm:$0xff]
  %v409 = vld [vmem:[%s4 + $0xc8] sm:$0xff]
  %v410 = vld [vmem:[%s4 + $0xd0] sm:$0xff]
  %v411 = vld [vmem:[%s4 + $0xd8] sm:$0xff]
  %v412 = vld [vmem:[%s4 + $0xe0] sm:$0xff]
  %v413 = vld [vmem:[%s4 + $0xe8] sm:$0xff]
  %v414 = vld [vmem:[%s4 + $0xf0] sm:$0xff]
  %v415 = vld [vmem:[%s4 + $0xf8] sm:$0xff]
  %v416 = vld [vmem:[%s4 + $0x100] sm:$0xff]
  %v417 = vld [vmem:[%s4 + $0x108] sm:$0xff]
  %v418 = vld [vmem:[%s4 + $0x110] sm:$0xff]
  %v419 = vld [vmem:[%s4 + $0x118] sm:$0xff]
  %v420 = vld [vmem:[%s4 + $0x120] sm:$0xff]
  %v421 = vld [vmem:[%s4 + $0x128] sm:$0xff]
  %v422 = vld [vmem:[%s4 + $0x130] sm:$0xff]
  %v423 = vld [vmem:[%s4 + $0x138] sm:$0xff]
  %v424 = vld [vmem:[%s4 + $0x140] sm:$0xff]
  %v425 = vld [vmem:[%s4 + $0x148] sm:$0xff]
  %v426 = vld [vmem:[%s4 + $0x150] sm:$0xff]
  %v427 = vld [vmem:[%s4 + $0x158] sm:$0xff]
  %v428 = vld [vmem:[%s4 + $0x160] sm:$0xff]
  %v429 = vld [vmem:[%s4 + $0x168] sm:$0xff]
  %v430 = vld [vmem:[%s4 + $0x170] sm:$0xff]
  %v431 = vld [vmem:[%s4 + $0x178] sm:$0xff]
  %v432 = vld [vmem:[%s4 + $0x180] sm:$0xff]
  %v433 = vld [vmem:[%s4 + $0x188] sm:$0xff]
  %v434 = vld [vmem:[%s4 + $0x190] sm:$0xff]
  %v435 = vld [vmem:[%s4 + $0x198] sm:$0xff]
  %v436 = vld [vmem:[%s4 + $0x1a0] sm:$0xff]
  %v437 = vld [vmem:[%s4 + $0x1a8] sm:$0xff]
  %v438 = vld [vmem:[%s4 + $0x1b0] sm:$0xff]
  %v439 = vld [vmem:[%s4 + $0x1b8] sm:$0xff]
  %v440 = vld [vmem:[%s4 + $0x1c0] sm:$0xff]
  %v441 = vld [vmem:[%s4 + $0x1c8] sm:$0xff]
  %v442 = vld [vmem:[%s4 + $0x1d0] sm:$0xff]
  %v443 = vld [vmem:[%s4 + $0x1d8] sm:$0xff]
  %v444 = vld [vmem:[%s4 + $0x1e0] sm:$0xff]
  %v445 = vld [vmem:[%s4 + $0x1e8] sm:$0xff]
  %v446 = vld [vmem:[%s4 + $0x1f0] sm:$0xff]
  %v447 = vld [vmem:[%s4 + $0x1f8] sm:$0xff]
  %v448 = vld [vmem:[%s1] sm:$0xff]
  %v449 = vld [vmem:[%s2] sm:$0xff]
  %v450 = vld [vmem:[#allocation2] sm:$0xff]
  %v451 = vld [vmem:[#allocation2 + $0x8] sm:$0xff]
  %v452 = vld [vmem:[#allocation2 + $0x10] sm:$0xff]
  %v453 = vld [vmem:[#allocation2 + $0x18] sm:$0xff]
  %454 = vmatprep.subr.mxu0 %v385
  %455 = vmatpush1.msra.mxu0 %v384
  %456 = vmatprep.subr.mxu0 %v389
  %457 = vmatpush1.msra.mxu0 %v388
  %458 = vmatprep.subr.mxu0 %v393
  %459 = vmatpush1.msra.mxu0 %v392
  %460 = vmatprep.subr.mxu0 %v397
  %461 = vmatpush1.msra.mxu0 %v396
  %462 = vmatprep.subr.mxu0 %v401
  %463 = vmatpush1.msra.mxu0 %v400
  %464 = vmatprep.subr.mxu0 %v405
  %465 = vmatpush1.msra.mxu0 %v404
  %466 = vmatprep.subr.mxu0 %v409
  %467 = vmatpush1.msra.mxu0 %v408
  %468 = vmatprep.subr.mxu0 %v413
  %469 = vmatpush1.msra.mxu0 %v412
  %470 = vmatprep.subr.mxu0 %v417
  %471 = vmatpush1.msra.mxu0 %v416
  %472 = vmatprep.subr.mxu0 %v421
  %473 = vmatpush1.msra.mxu0 %v420
  %474 = vmatprep.subr.mxu0 %v425
  %475 = vmatpush1.msra.mxu0 %v424
  %476 = vmatprep.subr.mxu0 %v429
  %477 = vmatpush1.msra.mxu0 %v428
  %478 = vmatprep.subr.mxu0 %v433
  %479 = vmatpush1.msra.mxu0 %v432
  %480 = vmatprep.subr.mxu0 %v437
  %481 = vmatpush1.msra.mxu0 %v436
  %482 = vmatprep.subr.mxu0 %v441
  %483 = vmatpush1.msra.mxu0 %v440
  %484 = vmatprep.subr.mxu0 %v445
  %485 = vmatpush1.msra.mxu0 %v444
  %486 = vmatprep.subr.mxu0 0.0
  %487 = vmatpush1.msra.mxu0 0.0
  %488 = vmatprep.subr.mxu0 0.0
  %489 = vmatpush1.msra.mxu0 0.0
  %490 = vmatprep.subr.mxu0 0.0
  %491 = vmatpush1.msra.mxu0 0.0
  %492 = vmatprep.subr.mxu0 0.0
  %493 = vmatpush1.msra.mxu0 0.0
  %494 = vmatprep.subr.mxu0 0.0
  %495 = vmatpush1.msra.mxu0 0.0
  %496 = vmatprep.subr.mxu0 0.0
  %497 = vmatpush1.msra.mxu0 0.0
  %498 = vmatprep.subr.mxu0 0.0
  %499 = vmatpush1.msra.mxu0 0.0
  %500 = vmatprep.subr.mxu0 0.0
  %501 = vmatpush1.msra.mxu0 0.0
  %502 = vmatprep.subr.mxu0 0.0
  %503 = vmatpush1.msra.mxu0 0.0
  %504 = vmatprep.subr.mxu0 0.0
  %505 = vmatpush1.msra.mxu0 0.0
  %506 = vmatprep.subr.mxu0 0.0
  %507 = vmatpush1.msra.mxu0 0.0
  %508 = vmatprep.subr.mxu0 0.0
  %509 = vmatpush1.msra.mxu0 0.0
  %510 = vmatprep.subr.mxu0 0.0
  %511 = vmatpush1.msra.mxu0 0.0
  %512 = vmatprep.subr.mxu0 0.0
  %513 = vmatpush1.msra.mxu0 0.0
  %514 = vmatprep.subr.mxu0 0.0
  %515 = vmatpush1.msra.mxu0 0.0
  %516 = vmatprep.subr.mxu0 0.0
  %517 = vmatpush1.msra.mxu0 0.0
  %518 = vmatprep.mubr.f32.mxu0 0.0
  %519 = vmatmul.mubr.f32.gmra.mrb[0].mxu0 %v448
  %v520 = vpop.f32.mrb[0].mxu0
  %v521 = vadd.f32 0.0, %v520
  %v522 = vpop.f32.mrb[0].mxu0
  %v523 = vadd.f32 0.0, %v522
  %524 = vdwg.mxu0
  %525 = vmatprep.subr.mxu0 %v387
  %526 = vmatpush1.msra.mxu0 %v386
  %527 = vmatprep.subr.mxu0 %v391
  %528 = vmatpush1.msra.mxu0 %v390
  %529 = vmatprep.subr.mxu0 %v395
  %530 = vmatpush1.msra.mxu0 %v394
  %531 = vmatprep.subr.mxu0 %v399
  %532 = vmatpush1.msra.mxu0 %v398
  %533 = vmatprep.subr.mxu0 %v403
  %534 = vmatpush1.msra.mxu0 %v402
  %535 = vmatprep.subr.mxu0 %v407
  %536 = vmatpush1.msra.mxu0 %v406
  %537 = vmatprep.subr.mxu0 %v411
  %538 = vmatpush1.msra.mxu0 %v410
  %539 = vmatprep.subr.mxu0 %v415
  %540 = vmatpush1.msra.mxu0 %v414
  %541 = vmatprep.subr.mxu0 %v419
  %542 = vmatpush1.msra.mxu0 %v418
  %543 = vmatprep.subr.mxu0 %v423
  %544 = vmatpush1.msra.mxu0 %v422
  %545 = vmatprep.subr.mxu0 %v427
  %546 = vmatpush1.msra.mxu0 %v426
  %547 = vmatprep.subr.mxu0 %v431
  %548 = vmatpush1.msra.mxu0 %v430
  %549 = vmatprep.subr.mxu0 %v435
  %550 = vmatpush1.msra.mxu0 %v434
  %551 = vmatprep.subr.mxu0 %v439
  %552 = vmatpush1.msra.mxu0 %v438
  %553 = vmatprep.subr.mxu0 %v443
  %554 = vmatpush1.msra.mxu0 %v442
  %555 = vmatprep.subr.mxu0 %v447
  %556 = vmatpush1.msra.mxu0 %v446
  %557 = vmatprep.subr.mxu0 0.0
  %558 = vmatpush1.msra.mxu0 0.0
  %559 = vmatprep.subr.mxu0 0.0
  %560 = vmatpush1.msra.mxu0 0.0
  %561 = vmatprep.subr.mxu0 0.0
  %562 = vmatpush1.msra.mxu0 0.0
  %563 = vmatprep.subr.mxu0 0.0
  %564 = vmatpush1.msra.mxu0 0.0
  %565 = vmatprep.subr.mxu0 0.0
  %566 = vmatpush1.msra.mxu0 0.0
  %567 = vmatprep.subr.mxu0 0.0
  %568 = vmatpush1.msra.mxu0 0.0
  %569 = vmatprep.subr.mxu0 0.0
  %570 = vmatpush1.msra.mxu0 0.0
  %571 = vmatprep.subr.mxu0 0.0
  %572 = vmatpush1.msra.mxu0 0.0
  %573 = vmatprep.subr.mxu0 0.0
  %574 = vmatpush1.msra.mxu0 0.0
  %575 = vmatprep.subr.mxu0 0.0
  %576 = vmatpush1.msra.mxu0 0.0
  %577 = vmatprep.subr.mxu0 0.0
  %578 = vmatpush1.msra.mxu0 0.0
  %579 = vmatprep.subr.mxu0 0.0
  %580 = vmatpush1.msra.mxu0 0.0
  %581 = vmatprep.subr.mxu0 0.0
  %582 = vmatpush1.msra.mxu0 0.0
  %583 = vmatprep.subr.mxu0 0.0
  %584 = vmatpush1.msra.mxu0 0.0
  %585 = vmatprep.subr.mxu0 0.0
  %586 = vmatpush1.msra.mxu0 0.0
  %587 = vmatprep.subr.mxu0 0.0
  %588 = vmatpush1.msra.mxu0 0.0
  %589 = vmatprep.mubr.f32.mxu0 0.0
  %590 = vmatmul.mubr.f32.gmra.mrb[0].mxu0 %v448
  %v591 = vpop.f32.mrb[0].mxu0
  %v592 = vadd.f32 0.0, %v591
  %v593 = vpop.f32.mrb[0].mxu0
  %v594 = vadd.f32 0.0, %v593
  %595 = vdwg.mxu0
  %v596 = vadd.f32 %v450, %v521
  %v597 = vadd.f32 %v451, %v523
  %v598 = vadd.f32 %v452, %v592
  %v599 = vadd.f32 %v453, %v594
  %v600 = vxor.u32 %v596, 2147483648
  %v601 = vmul.f32 %v600, 1.442695
  %v602 = vpow.pop %v601
  %v603 = vadd.f32 %v602, 1.0
  %v604 = vrcp.pop %v603
  %v605 = vmul.f32 1.0, %v604
  %v606 = vxor.u32 %v597, 2147483648
  %v607 = vmul.f32 %v606, 1.442695
  %v608 = vpow.pop %v607
  %v609 = vadd.f32 %v608, 1.0
  %v610 = vrcp.pop %v609
  %v611 = vmul.f32 1.0, %v610
  %v612 = vtanh.pop %v598
  %v613 = vxor.u32 %v599, 2147483648
  %v614 = vmul.f32 %v613, 1.442695
  %v615 = vpow.pop %v614
  %v616 = vadd.f32 %v615, 1.0
  %v617 = vrcp.pop %v616
  %v618 = vmul.f32 1.0, %v617
  %v619 = vmul.f32 %v611, %v449
  %v620 = vmul.f32 %v605, %v612
  %v621 = vadd.f32 %v619, %v620
  %v622 = vtanh.pop %v621
  %v623 = vmul.f32 %v618, %v622
  %624 = vst [vmem:[#allocation3] sm:$0xff] %v623
  %s625 = scalar_lea.vmem [#allocation2], 32
  %v626 = vld [vmem:[%s625] sm:$0xff]
  %v627 = vld [vmem:[%s625 + $0x8] sm:$0xff]
  %v628 = vld [vmem:[%s625 + $0x10] sm:$0xff]
  %v629 = vld [vmem:[%s625 + $0x18] sm:$0xff]
  %630 = vmatprep.subr.mxu0 %v385
  %631 = vmatpush1.msra.mxu0 %v384
  %632 = vmatprep.subr.mxu0 %v389
  %633 = vmatpush1.msra.mxu0 %v388
  %634 = vmatprep.subr.mxu0 %v393
  %635 = vmatpush1.msra.mxu0 %v392
  %636 = vmatprep.subr.mxu0 %v397
  %637 = vmatpush1.msra.mxu0 %v396
  %638 = vmatprep.subr.mxu0 %v401
  %639 = vmatpush1.msra.mxu0 %v400
  %640 = vmatprep.subr.mxu0 %v405
  %641 = vmatpush1.msra.mxu0 %v404
  %642 = vmatprep.subr.mxu0 %v409
  %643 = vmatpush1.msra.mxu0 %v408
  %644 = vmatprep.subr.mxu0 %v413
  %645 = vmatpush1.msra.mxu0 %v412
  %646 = vmatprep.subr.mxu0 %v417
  %647 = vmatpush1.msra.mxu0 %v416
  %648 = vmatprep.subr.mxu0 %v421
  %649 = vmatpush1.msra.mxu0 %v420
  %650 = vmatprep.subr.mxu0 %v425
  %651 = vmatpush1.msra.mxu0 %v424
  %652 = vmatprep.subr.mxu0 %v429
  %653 = vmatpush1.msra.mxu0 %v428
  %654 = vmatprep.subr.mxu0 %v433
  %655 = vmatpush1.msra.mxu0 %v432
  %656 = vmatprep.subr.mxu0 %v437
  %657 = vmatpush1.msra.mxu0 %v436
  %658 = vmatprep.subr.mxu0 %v441
  %659 = vmatpush1.msra.mxu0 %v440
  %660 = vmatprep.subr.mxu0 %v445
  %661 = vmatpush1.msra.mxu0 %v444
  %662 = vmatprep.subr.mxu0 0.0
  %663 = vmatpush1.msra.mxu0 0.0
  %664 = vmatprep.subr.mxu0 0.0
  %665 = vmatpush1.msra.mxu0 0.0
  %666 = vmatprep.subr.mxu0 0.0
  %667 = vmatpush1.msra.mxu0 0.0
  %668 = vmatprep.subr.mxu0 0.0
  %669 = vmatpush1.msra.mxu0 0.0
  %670 = vmatprep.subr.mxu0 0.0
  %671 = vmatpush1.msra.mxu0 0.0
  %672 = vmatprep.subr.mxu0 0.0
  %673 = vmatpush1.msra.mxu0 0.0
  %674 = vmatprep.subr.mxu0 0.0
  %675 = vmatpush1.msra.mxu0 0.0
  %676 = vmatprep.subr.mxu0 0.0
  %677 = vmatpush1.msra.mxu0 0.0
  %678 = vmatprep.subr.mxu0 0.0
  %679 = vmatpush1.msra.mxu0 0.0
  %680 = vmatprep.subr.mxu0 0.0
  %681 = vmatpush1.msra.mxu0 0.0
  %682 = vmatprep.subr.mxu0 0.0
  %683 = vmatpush1.msra.mxu0 0.0
  %684 = vmatprep.subr.mxu0 0.0
  %685 = vmatpush1.msra.mxu0 0.0
  %686 = vmatprep.subr.mxu0 0.0
  %687 = vmatpush1.msra.mxu0 0.0
  %688 = vmatprep.subr.mxu0 0.0
  %689 = vmatpush1.msra.mxu0 0.0
  %690 = vmatprep.subr.mxu0 0.0
  %691 = vmatpush1.msra.mxu0 0.0
  %692 = vmatprep.subr.mxu0 0.0
  %693 = vmatpush1.msra.mxu0 0.0
  %694 = vmatprep.mubr.f32.mxu0 0.0
  %695 = vmatmul.mubr.f32.gmra.mrb[0].mxu0 %v623
  %v696 = vpop.f32.mrb[0].mxu0
  %v697 = vadd.f32 0.0, %v696
  %v698 = vpop.f32.mrb[0].mxu0
  %v699 = vadd.f32 0.0, %v698
  %700 = vdwg.mxu0
  %701 = vmatprep.subr.mxu0 %v387
  %702 = vmatpush1.msra.mxu0 %v386
  %703 = vmatprep.subr.mxu0 %v391
  %704 = vmatpush1.msra.mxu0 %v390
  %705 = vmatprep.subr.mxu0 %v395
  %706 = vmatpush1.msra.mxu0 %v394
  %707 = vmatprep.subr.mxu0 %v399
  %708 = vmatpush1.msra.mxu0 %v398
  %709 = vmatprep.subr.mxu0 %v403
  %710 = vmatpush1.msra.mxu0 %v402
  %711 = vmatprep.subr.mxu0 %v407
  %712 = vmatpush1.msra.mxu0 %v406
  %713 = vmatprep.subr.mxu0 %v411
  %714 = vmatpush1.msra.mxu0 %v410
  %715 = vmatprep.subr.mxu0 %v415
  %716 = vmatpush1.msra.mxu0 %v414
  %717 = vmatprep.subr.mxu0 %v419
  %718 = vmatpush1.msra.mxu0 %v418
  %719 = vmatprep.subr.mxu0 %v423
  %720 = vmatpush1.msra.mxu0 %v422
  %721 = vmatprep.subr.mxu0 %v427
  %722 = vmatpush1.msra.mxu0 %v426
  %723 = vmatprep.subr.mxu0 %v431
  %724 = vmatpush1.msra.mxu0 %v430
  %725 = vmatprep.subr.mxu0 %v435
  %726 = vmatpush1.msra.mxu0 %v434
  %727 = vmatprep.subr.mxu0 %v439
  %728 = vmatpush1.msra.mxu0 %v438
  %729 = vmatprep.subr.mxu0 %v443
  %730 = vmatpush1.msra.mxu0 %v442
  %731 = vmatprep.subr.mxu0 %v447
  %732 = vmatpush1.msra.mxu0 %v446
  %733 = vmatprep.subr.mxu0 0.0
  %734 = vmatpush1.msra.mxu0 0.0
  %735 = vmatprep.subr.mxu0 0.0
  %736 = vmatpush1.msra.mxu0 0.0
  %737 = vmatprep.subr.mxu0 0.0
  %738 = vmatpush1.msra.mxu0 0.0
  %739 = vmatprep.subr.mxu0 0.0
  %740 = vmatpush1.msra.mxu0 0.0
  %741 = vmatprep.subr.mxu0 0.0
  %742 = vmatpush1.msra.mxu0 0.0
  %743 = vmatprep.subr.mxu0 0.0
  %744 = vmatpush1.msra.mxu0 0.0
  %745 = vmatprep.subr.mxu0 0.0
  %746 = vmatpush1.msra.mxu0 0.0
  %747 = vmatprep.subr.mxu0 0.0
  %748 = vmatpush1.msra.mxu0 0.0
  %749 = vmatprep.subr.mxu0 0.0
  %750 = vmatpush1.msra.mxu0 0.0
  %751 = vmatprep.subr.mxu0 0.0
  %752 = vmatpush1.msra.mxu0 0.0
  %753 = vmatprep.subr.mxu0 0.0
  %754 = vmatpush1.msra.mxu0 0.0
  %755 = vmatprep.subr.mxu0 0.0
  %756 = vmatpush1.msra.mxu0 0.0
  %757 = vmatprep.subr.mxu0 0.0
  %758 = vmatpush1.msra.mxu0 0.0
  %759 = vmatprep.subr.mxu0 0.0
  %760 = vmatpush1.msra.mxu0 0.0
  %761 = vmatprep.subr.mxu0 0.0
  %762 = vmatpush1.msra.mxu0 0.0
  %763 = vmatprep.subr.mxu0 0.0
  %764 = vmatpush1.msra.mxu0 0.0
  %765 = vmatprep.mubr.f32.mxu0 0.0
  %766 = vmatmul.mubr.f32.gmra.mrb[0].mxu0 %v623
  %v767 = vpop.f32.mrb[0].mxu0
  %v768 = vadd.f32 0.0, %v767
  %v769 = vpop.f32.mrb[0].mxu0
  %v770 = vadd.f32 0.0, %v769
  %771 = vdwg.mxu0
  %v772 = vadd.f32 %v626, %v697
  %v773 = vadd.f32 %v627, %v699
  %v774 = vadd.f32 %v628, %v768
  %v775 = vadd.f32 %v629, %v770
  %v776 = vxor.u32 %v772, 2147483648
  %v777 = vmul.f32 %v776, 1.442695
  %v778 = vpow.pop %v777
  %v779 = vadd.f32 %v778, 1.0
  %v780 = vrcp.pop %v779
  %v781 = vmul.f32 1.0, %v780
  %v782 = vxor.u32 %v773, 2147483648
  %v783 = vmul.f32 %v782, 1.442695
  %v784 = vpow.pop %v783
  %v785 = vadd.f32 %v784, 1.0
  %v786 = vrcp.pop %v785
  %v787 = vmul.f32 1.0, %v786
  %v788 = vtanh.pop %v774
  %v789 = vxor.u32 %v775, 2147483648
  %v790 = vmul.f32 %v789, 1.442695
  %v791 = vpow.pop %v790
  %v792 = vadd.f32 %v791, 1.0
  %v793 = vrcp.pop %v792
  %v794 = vmul.f32 1.0, %v793
  %v795 = vmul.f32 %v787, %v621
  %v796 = vmul.f32 %v781, %v788
  %v797 = vadd.f32 %v795, %v796
  %v798 = vtanh.pop %v797
  %v799 = vmul.f32 %v794, %v798
  %s800 = scalar_lea.vmem [#allocation3], 8
  %801 = vst [vmem:[%s800] sm:$0xff] %v799
  %s802 = scalar_lea.vmem [#allocation2], 64
  %v803 = vld [vmem:[%s802] sm:$0xff]
  %v804 = vld [vmem:[%s802 + $0x8] sm:$0xff]
  %v805 = vld [vmem:[%s802 + $0x10] sm:$0xff]
  %v806 = vld [vmem:[%s802 + $0x18] sm:$0xff]
  %807 = vmatprep.subr.mxu0 %v385
  %808 = vmatpush1.msra.mxu0 %v384
  %809 = vmatprep.subr.mxu0 %v389
  %810 = vmatpush1.msra.mxu0 %v388
  %811 = vmatprep.subr.mxu0 %v393
  %812 = vmatpush1.msra.mxu0 %v392
  %813 = vmatprep.subr.mxu0 %v397
  %814 = vmatpush1.msra.mxu0 %v396
  %815 = vmatprep.subr.mxu0 %v401
  %816 = vmatpush1.msra.mxu0 %v400
  %817 = vmatprep.subr.mxu0 %v405
  %818 = vmatpush1.msra.mxu0 %v404
  %819 = vmatprep.subr.mxu0 %v409
  %820 = vmatpush1.msra.mxu0 %v408
  %821 = vmatprep.subr.mxu0 %v413
  %822 = vmatpush1.msra.mxu0 %v412
  %823 = vmatprep.subr.mxu0 %v417
  %824 = vmatpush1.msra.mxu0 %v416
  %825 = vmatprep.subr.mxu0 %v421
  %826 = vmatpush1.msra.mxu0 %v420
  %827 = vmatprep.subr.mxu0 %v425
  %828 = vmatpush1.msra.mxu0 %v424
  %829 = vmatprep.subr.mxu0 %v429
  %830 = vmatpush1.msra.mxu0 %v428
  %831 = vmatprep.subr.mxu0 %v433
  %832 = vmatpush1.msra.mxu0 %v432
  %833 = vmatprep.subr.mxu0 %v437
  %834 = vmatpush1.msra.mxu0 %v436
  %835 = vmatprep.subr.mxu0 %v441
  %836 = vmatpush1.msra.mxu0 %v440
  %837 = vmatprep.subr.mxu0 %v445
  %838 = vmatpush1.msra.mxu0 %v444
  %839 = vmatprep.subr.mxu0 0.0
  %840 = vmatpush1.msra.mxu0 0.0
  %841 = vmatprep.subr.mxu0 0.0
  %842 = vmatpush1.msra.mxu0 0.0
  %843 = vmatprep.subr.mxu0 0.0
  %844 = vmatpush1.msra.mxu0 0.0
  %845 = vmatprep.subr.mxu0 0.0
  %846 = vmatpush1.msra.mxu0 0.0
  %847 = vmatprep.subr.mxu0 0.0
  %848 = vmatpush1.msra.mxu0 0.0
  %849 = vmatprep.subr.mxu0 0.0
  %850 = vmatpush1.msra.mxu0 0.0
  %851 = vmatprep.subr.mxu0 0.0
  %852 = vmatpush1.msra.mxu0 0.0
  %853 = vmatprep.subr.mxu0 0.0
  %854 = vmatpush1.msra.mxu0 0.0
  %855 = vmatprep.subr.mxu0 0.0
  %856 = vmatpush1.msra.mxu0 0.0
  %857 = vmatprep.subr.mxu0 0.0
  %858 = vmatpush1.msra.mxu0 0.0
  %859 = vmatprep.subr.mxu0 0.0
  %860 = vmatpush1.msra.mxu0 0.0
  %861 = vmatprep.subr.mxu0 0.0
  %862 = vmatpush1.msra.mxu0 0.0
  %863 = vmatprep.subr.mxu0 0.0
  %864 = vmatpush1.msra.mxu0 0.0
  %865 = vmatprep.subr.mxu0 0.0
  %866 = vmatpush1.msra.mxu0 0.0
  %867 = vmatprep.subr.mxu0 0.0
  %868 = vmatpush1.msra.mxu0 0.0
  %869 = vmatprep.subr.mxu0 0.0
  %870 = vmatpush1.msra.mxu0 0.0
  %871 = vmatprep.mubr.f32.mxu0 0.0
  %872 = vmatmul.mubr.f32.gmra.mrb[0].mxu0 %v799
  %v873 = vpop.f32.mrb[0].mxu0
  %v874 = vadd.f32 0.0, %v873
  %v875 = vpop.f32.mrb[0].mxu0
  %v876 = vadd.f32 0.0, %v875
  %877 = vdwg.mxu0
  %878 = vmatprep.subr.mxu0 %v387
  %879 = vmatpush1.msra.mxu0 %v386
  %880 = vmatprep.subr.mxu0 %v391
  %881 = vmatpush1.msra.mxu0 %v390
  %882 = vmatprep.subr.mxu0 %v395
  %883 = vmatpush1.msra.mxu0 %v394
  %884 = vmatprep.subr.mxu0 %v399
  %885 = vmatpush1.msra.mxu0 %v398
  %886 = vmatprep.subr.mxu0 %v403
  %887 = vmatpush1.msra.mxu0 %v402
  %888 = vmatprep.subr.mxu0 %v407
  %889 = vmatpush1.msra.mxu0 %v406
  %890 = vmatprep.subr.mxu0 %v411
  %891 = vmatpush1.msra.mxu0 %v410
  %892 = vmatprep.subr.mxu0 %v415
  %893 = vmatpush1.msra.mxu0 %v414
  %894 = vmatprep.subr.mxu0 %v419
  %895 = vmatpush1.msra.mxu0 %v418
  %896 = vmatprep.subr.mxu0 %v423
  %897 = vmatpush1.msra.mxu0 %v422
  %898 = vmatprep.subr.mxu0 %v427
  %899 = vmatpush1.msra.mxu0 %v426
  %900 = vmatprep.subr.mxu0 %v431
  %901 = vmatpush1.msra.mxu0 %v430
  %902 = vmatprep.subr.mxu0 %v435
  %903 = vmatpush1.msra.mxu0 %v434
  %904 = vmatprep.subr.mxu0 %v439
  %905 = vmatpush1.msra.mxu0 %v438
  %906 = vmatprep.subr.mxu0 %v443
  %907 = vmatpush1.msra.mxu0 %v442
  %908 = vmatprep.subr.mxu0 %v447
  %909 = vmatpush1.msra.mxu0 %v446
  %910 = vmatprep.subr.mxu0 0.0
  %911 = vmatpush1.msra.mxu0 0.0
  %912 = vmatprep.subr.mxu0 0.0
  %913 = vmatpush1.msra.mxu0 0.0
  %914 = vmatprep.subr.mxu0 0.0
  %915 = vmatpush1.msra.mxu0 0.0
  %916 = vmatprep.subr.mxu0 0.0
  %917 = vmatpush1.msra.mxu0 0.0
  %918 = vmatprep.subr.mxu0 0.0
  %919 = vmatpush1.msra.mxu0 0.0
  %920 = vmatprep.subr.mxu0 0.0
  %921 = vmatpush1.msra.mxu0 0.0
  %922 = vmatprep.subr.mxu0 0.0
  %923 = vmatpush1.msra.mxu0 0.0
  %924 = vmatprep.subr.mxu0 0.0
  %925 = vmatpush1.msra.mxu0 0.0
  %926 = vmatprep.subr.mxu0 0.0
  %927 = vmatpush1.msra.mxu0 0.0
  %928 = vmatprep.subr.mxu0 0.0
  %929 = vmatpush1.msra.mxu0 0.0
  %930 = vmatprep.subr.mxu0 0.0
  %931 = vmatpush1.msra.mxu0 0.0
  %932 = vmatprep.subr.mxu0 0.0
  %933 = vmatpush1.msra.mxu0 0.0
  %934 = vmatprep.subr.mxu0 0.0
  %935 = vmatpush1.msra.mxu0 0.0
  %936 = vmatprep.subr.mxu0 0.0
  %937 = vmatpush1.msra.mxu0 0.0
  %938 = vmatprep.subr.mxu0 0.0
  %939 = vmatpush1.msra.mxu0 0.0
  %940 = vmatprep.subr.mxu0 0.0
  %941 = vmatpush1.msra.mxu0 0.0
  %942 = vmatprep.mubr.f32.mxu0 0.0
  %943 = vmatmul.mubr.f32.gmra.mrb[0].mxu0 %v799
  %v944 = vpop.f32.mrb[0].mxu0
  %v945 = vadd.f32 0.0, %v944
  %v946 = vpop.f32.mrb[0].mxu0
  %v947 = vadd.f32 0.0, %v946
  %948 = vdwg.mxu0
  %v949 = vadd.f32 %v803, %v874
  %v950 = vadd.f32 %v804, %v876
  %v951 = vadd.f32 %v805, %v945
  %v952 = vadd.f32 %v806, %v947
  %v953 = vxor.u32 %v949, 2147483648
  %v954 = vmul.f32 %v953, 1.442695
  %v955 = vpow.pop %v954
  %v956 = vadd.f32 %v955, 1.0
  %v957 = vrcp.pop %v956
  %v958 = vmul.f32 1.0, %v957
  %v959 = vxor.u32 %v950, 2147483648
  %v960 = vmul.f32 %v959, 1.442695
  %v961 = vpow.pop %v960
  %v962 = vadd.f32 %v961, 1.0
  %v963 = vrcp.pop %v962
  %v964 = vmul.f32 1.0, %v963
  %v965 = vtanh.pop %v951
  %v966 = vxor.u32 %v952, 2147483648
  %v967 = vmul.f32 %v966, 1.442695
  %v968 = vpow.pop %v967
  %v969 = vadd.f32 %v968, 1.0
  %v970 = vrcp.pop %v969
  %v971 = vmul.f32 1.0, %v970
  %v972 = vmul.f32 %v964, %v797
  %v973 = vmul.f32 %v958, %v965
  %v974 = vadd.f32 %v972, %v973
  %v975 = vtanh.pop %v974
  %v976 = vmul.f32 %v971, %v975
  %s977 = scalar_lea.vmem [#allocation3], 16
  %978 = vst [vmem:[%s977] sm:$0xff] %v976
  %s979 = scalar_lea.vmem [#allocation2], 96
  %v980 = vld [vmem:[%s979] sm:$0xff]
  %v981 = vld [vmem:[%s979 + $0x8] sm:$0xff]
  %v982 = vld [vmem:[%s979 + $0x10] sm:$0xff]
  %v983 = vld [vmem:[%s979 + $0x18] sm:$0xff]
  %984 = vmatprep.subr.mxu0 %v385
  %985 = vmatpush1.msra.mxu0 %v384
  %986 = vmatprep.subr.mxu0 %v389
  %987 = vmatpush1.msra.mxu0 %v388
  %988 = vmatprep.subr.mxu0 %v393
  %989 = vmatpush1.msra.mxu0 %v392
  %990 = vmatprep.subr.mxu0 %v397
  %991 = vmatpush1.msra.mxu0 %v396
  %992 = vmatprep.subr.mxu0 %v401
  %993 = vmatpush1.msra.mxu0 %v400
  %994 = vmatprep.subr.mxu0 %v405
  %995 = vmatpush1.msra.mxu0 %v404
  %996 = vmatprep.subr.mxu0 %v409
  %997 = vmatpush1.msra.mxu0 %v408
  %998 = vmatprep.subr.mxu0 %v413
  %999 = vmatpush1.msra.mxu0 %v412
  %1000 = vmatprep.subr.mxu0 %v417
  %1001 = vmatpush1.msra.mxu0 %v416
  %1002 = vmatprep.subr.mxu0 %v421
  %1003 = vmatpush1.msra.mxu0 %v420
  %1004 = vmatprep.subr.mxu0 %v425
  %1005 = vmatpush1.msra.mxu0 %v424
  %1006 = vmatprep.subr.mxu0 %v429
  %1007 = vmatpush1.msra.mxu0 %v428
  %1008 = vmatprep.subr.mxu0 %v433
  %1009 = vmatpush1.msra.mxu0 %v432
  %1010 = vmatprep.subr.mxu0 %v437
  %1011 = vmatpush1.msra.mxu0 %v436
  %1012 = vmatprep.subr.mxu0 %v441
  %1013 = vmatpush1.msra.mxu0 %v440
  %1014 = vmatprep.subr.mxu0 %v445
  %1015 = vmatpush1.msra.mxu0 %v444
  %1016 = vmatprep.subr.mxu0 0.0
  %1017 = vmatpush1.msra.mxu0 0.0
  %1018 = vmatprep.subr.mxu0 0.0
  %1019 = vmatpush1.msra.mxu0 0.0
  %1020 = vmatprep.subr.mxu0 0.0
  %1021 = vmatpush1.msra.mxu0 0.0
  %1022 = vmatprep.subr.mxu0 0.0
  %1023 = vmatpush1.msra.mxu0 0.0
  %1024 = vmatprep.subr.mxu0 0.0
  %1025 = vmatpush1.msra.mxu0 0.0
  %1026 = vmatprep.subr.mxu0 0.0
  %1027 = vmatpush1.msra.mxu0 0.0
  %1028 = vmatprep.subr.mxu0 0.0
  %1029 = vmatpush1.msra.mxu0 0.0
  %1030 = vmatprep.subr.mxu0 0.0
  %1031 = vmatpush1.msra.mxu0 0.0
  %1032 = vmatprep.subr.mxu0 0.0
  %1033 = vmatpush1.msra.mxu0 0.0
  %1034 = vmatprep.subr.mxu0 0.0
  %1035 = vmatpush1.msra.mxu0 0.0
  %1036 = vmatprep.subr.mxu0 0.0
  %1037 = vmatpush1.msra.mxu0 0.0
  %1038 = vmatprep.subr.mxu0 0.0
  %1039 = vmatpush1.msra.mxu0 0.0
  %1040 = vmatprep.subr.mxu0 0.0
  %1041 = vmatpush1.msra.mxu0 0.0
  %1042 = vmatprep.subr.mxu0 0.0
  %1043 = vmatpush1.msra.mxu0 0.0
  %1044 = vmatprep.subr.mxu0 0.0
  %1045 = vmatpush1.msra.mxu0 0.0
  %1046 = vmatprep.subr.mxu0 0.0
  %1047 = vmatpush1.msra.mxu0 0.0
  %1048 = vmatprep.mubr.f32.mxu0 0.0
  %1049 = vmatmul.mubr.f32.gmra.mrb[0].mxu0 %v976
  %v1050 = vpop.f32.mrb[0].mxu0
  %v1051 = vadd.f32 0.0, %v1050
  %v1052 = vpop.f32.mrb[0].mxu0
  %v1053 = vadd.f32 0.0, %v1052
  %1054 = vdwg.mxu0
  %1055 = vmatprep.subr.mxu0 %v387
  %1056 = vmatpush1.msra.mxu0 %v386
  %1057 = vmatprep.subr.mxu0 %v391
  %1058 = vmatpush1.msra.mxu0 %v390
  %1059 = vmatprep.subr.mxu0 %v395
  %1060 = vmatpush1.msra.mxu0 %v394
  %1061 = vmatprep.subr.mxu0 %v399
  %1062 = vmatpush1.msra.mxu0 %v398
  %1063 = vmatprep.subr.mxu0 %v403
  %1064 = vmatpush1.msra.mxu0 %v402
  %1065 = vmatprep.subr.mxu0 %v407
  %1066 = vmatpush1.msra.mxu0 %v406
  %1067 = vmatprep.subr.mxu0 %v411
  %1068 = vmatpush1.msra.mxu0 %v410
  %1069 = vmatprep.subr.mxu0 %v415
  %1070 = vmatpush1.msra.mxu0 %v414
  %1071 = vmatprep.subr.mxu0 %v419
  %1072 = vmatpush1.msra.mxu0 %v418
  %1073 = vmatprep.subr.mxu0 %v423
  %1074 = vmatpush1.msra.mxu0 %v422
  %1075 = vmatprep.subr.mxu0 %v427
  %1076 = vmatpush1.msra.mxu0 %v426
  %1077 = vmatprep.subr.mxu0 %v431
  %1078 = vmatpush1.msra.mxu0 %v430
  %1079 = vmatprep.subr.mxu0 %v435
  %1080 = vmatpush1.msra.mxu0 %v434
  %1081 = vmatprep.subr.mxu0 %v439
  %1082 = vmatpush1.msra.mxu0 %v438
  %1083 = vmatprep.subr.mxu0 %v443
  %1084 = vmatpush1.msra.mxu0 %v442
  %1085 = vmatprep.subr.mxu0 %v447
  %1086 = vmatpush1.msra.mxu0 %v446
  %1087 = vmatprep.subr.mxu0 0.0
  %1088 = vmatpush1.msra.mxu0 0.0
  %1089 = vmatprep.subr.mxu0 0.0
  %1090 = vmatpush1.msra.mxu0 0.0
  %1091 = vmatprep.subr.mxu0 0.0
  %1092 = vmatpush1.msra.mxu0 0.0
  %1093 = vmatprep.subr.mxu0 0.0
  %1094 = vmatpush1.msra.mxu0 0.0
  %1095 = vmatprep.subr.mxu0 0.0
  %1096 = vmatpush1.msra.mxu0 0.0
  %1097 = vmatprep.subr.mxu0 0.0
  %1098 = vmatpush1.msra.mxu0 0.0
  %1099 = vmatprep.subr.mxu0 0.0
  %1100 = vmatpush1.msra.mxu0 0.0
  %1101 = vmatprep.subr.mxu0 0.0
  %1102 = vmatpush1.msra.mxu0 0.0
  %1103 = vmatprep.subr.mxu0 0.0
  %1104 = vmatpush1.msra.mxu0 0.0
  %1105 = vmatprep.subr.mxu0 0.0
  %1106 = vmatpush1.msra.mxu0 0.0
  %1107 = vmatprep.subr.mxu0 0.0
  %1108 = vmatpush1.msra.mxu0 0.0
  %1109 = vmatprep.subr.mxu0 0.0
  %1110 = vmatpush1.msra.mxu0 0.0
  %1111 = vmatprep.subr.mxu0 0.0
  %1112 = vmatpush1.msra.mxu0 0.0
  %1113 = vmatprep.subr.mxu0 0.0
  %1114 = vmatpush1.msra.mxu0 0.0
  %1115 = vmatprep.subr.mxu0 0.0
  %1116 = vmatpush1.msra.mxu0 0.0
  %1117 = vmatprep.subr.mxu0 0.0
  %1118 = vmatpush1.msra.mxu0 0.0
  %1119 = vmatprep.mubr.f32.mxu0 0.0
  %1120 = vmatmul.mubr.f32.gmra.mrb[0].mxu0 %v976
  %v1121 = vpop.f32.mrb[0].mxu0
  %v1122 = vadd.f32 0.0, %v1121
  %v1123 = vpop.f32.mrb[0].mxu0
  %v1124 = vadd.f32 0.0, %v1123
  %1125 = vdwg.mxu0
  %v1126 = vadd.f32 %v980, %v1051
  %v1127 = vadd.f32 %v981, %v1053
  %v1128 = vadd.f32 %v982, %v1122
  %v1129 = vadd.f32 %v983, %v1124
  %v1130 = vxor.u32 %v1126, 2147483648
  %v1131 = vmul.f32 %v1130, 1.442695
  %v1132 = vpow.pop %v1131
  %v1133 = vadd.f32 %v1132, 1.0
  %v1134 = vrcp.pop %v1133
  %v1135 = vmul.f32 1.0, %v1134
  %v1136 = vxor.u32 %v1127, 2147483648
  %v1137 = vmul.f32 %v1136, 1.442695
  %v1138 = vpow.pop %v1137
  %v1139 = vadd.f32 %v1138, 1.0
  %v1140 = vrcp.pop %v1139
  %v1141 = vmul.f32 1.0, %v1140
  %v1142 = vtanh.pop %v1128
  %v1143 = vxor.u32 %v1129, 2147483648
  %v1144 = vmul.f32 %v1143, 1.442695
  %v1145 = vpow.pop %v1144
  %v1146 = vadd.f32 %v1145, 1.0
  %v1147 = vrcp.pop %v1146
  %v1148 = vmul.f32 1.0, %v1147
  %v1149 = vmul.f32 %v1141, %v974
  %v1150 = vmul.f32 %v1135, %v1142
  %v1151 = vadd.f32 %v1149, %v1150
  %v1152 = vtanh.pop %v1151
  %v1153 = vmul.f32 %v1148, %v1152
  %s1154 = scalar_lea.vmem [#allocation3], 24
  %1155 = vst [vmem:[%s1154] sm:$0xff] %v1153
  %s1156 = scalar_lea.vmem [#allocation2], 128
  %v1157 = vld [vmem:[%s1156] sm:$0xff]
  %v1158 = vld [vmem:[%s1156 + $0x8] sm:$0xff]
  %v1159 = vld [vmem:[%s1156 + $0x10] sm:$0xff]
  %v1160 = vld [vmem:[%s1156 + $0x18] sm:$0xff]
  %1161 = vmatprep.subr.mxu0 %v385
  %1162 = vmatpush1.msra.mxu0 %v384
  %1163 = vmatprep.subr.mxu0 %v389
  %1164 = vmatpush1.msra.mxu0 %v388
  %1165 = vmatprep.subr.mxu0 %v393
  %1166 = vmatpush1.msra.mxu0 %v392
  %1167 = vmatprep.subr.mxu0 %v397
  %1168 = vmatpush1.msra.mxu0 %v396
  %1169 = vmatprep.subr.mxu0 %v401
  %1170 = vmatpush1.msra.mxu0 %v400
  %1171 = vmatprep.subr.mxu0 %v405
  %1172 = vmatpush1.msra.mxu0 %v404
  %1173 = vmatprep.subr.mxu0 %v409
  %1174 = vmatpush1.msra.mxu0 %v408
  %1175 = vmatprep.subr.mxu0 %v413
  %1176 = vmatpush1.msra.mxu0 %v412
  %1177 = vmatprep.subr.mxu0 %v417
  %1178 = vmatpush1.msra.mxu0 %v416
  %1179 = vmatprep.subr.mxu0 %v421
  %1180 = vmatpush1.msra.mxu0 %v420
  %1181 = vmatprep.subr.mxu0 %v425
  %1182 = vmatpush1.msra.mxu0 %v424
  %1183 = vmatprep.subr.mxu0 %v429
  %1184 = vmatpush1.msra.mxu0 %v428
  %1185 = vmatprep.subr.mxu0 %v433
  %1186 = vmatpush1.msra.mxu0 %v432
  %1187 = vmatprep.subr.mxu0 %v437
  %1188 = vmatpush1.msra.mxu0 %v436
  %1189 = vmatprep.subr.mxu0 %v441
  %1190 = vmatpush1.msra.mxu0 %v440
  %1191 = vmatprep.subr.mxu0 %v445
  %1192 = vmatpush1.msra.mxu0 %v444
  %1193 = vmatprep.subr.mxu0 0.0
  %1194 = vmatpush1.msra.mxu0 0.0
  %1195 = vmatprep.subr.mxu0 0.0
  %1196 = vmatpush1.msra.mxu0 0.0
  %1197 = vmatprep.subr.mxu0 0.0
  %1198 = vmatpush1.msra.mxu0 0.0
  %1199 = vmatprep.subr.mxu0 0.0
  %1200 = vmatpush1.msra.mxu0 0.0
  %1201 = vmatprep.subr.mxu0 0.0
  %1202 = vmatpush1.msra.mxu0 0.0
  %1203 = vmatprep.subr.mxu0 0.0
  %1204 = vmatpush1.msra.mxu0 0.0
  %1205 = vmatprep.subr.mxu0 0.0
  %1206 = vmatpush1.msra.mxu0 0.0
  %1207 = vmatprep.subr.mxu0 0.0
  %1208 = vmatpush1.msra.mxu0 0.0
  %1209 = vmatprep.subr.mxu0 0.0
  %1210 = vmatpush1.msra.mxu0 0.0
  %1211 = vmatprep.subr.mxu0 0.0
  %1212 = vmatpush1.msra.mxu0 0.0
  %1213 = vmatprep.subr.mxu0 0.0
  %1214 = vmatpush1.msra.mxu0 0.0
  %1215 = vmatprep.subr.mxu0 0.0
  %1216 = vmatpush1.msra.mxu0 0.0
  %1217 = vmatprep.subr.mxu0 0.0
  %1218 = vmatpush1.msra.mxu0 0.0
  %1219 = vmatprep.subr.mxu0 0.0
  %1220 = vmatpush1.msra.mxu0 0.0
  %1221 = vmatprep.subr.mxu0 0.0
  %1222 = vmatpush1.msra.mxu0 0.0
  %1223 = vmatprep.subr.mxu0 0.0
  %1224 = vmatpush1.msra.mxu0 0.0
  %1225 = vmatprep.mubr.f32.mxu0 0.0
  %1226 = vmatmul.mubr.f32.gmra.mrb[0].mxu0 %v1153
  %v1227 = vpop.f32.mrb[0].mxu0
  %v1228 = vadd.f32 0.0, %v1227
  %v1229 = vpop.f32.mrb[0].mxu0
  %v1230 = vadd.f32 0.0, %v1229
  %1231 = vdwg.mxu0
  %1232 = vmatprep.subr.mxu0 %v387
  %1233 = vmatpush1.msra.mxu0 %v386
  %1234 = vmatprep.subr.mxu0 %v391
  %1235 = vmatpush1.msra.mxu0 %v390
  %1236 = vmatprep.subr.mxu0 %v395
  %1237 = vmatpush1.msra.mxu0 %v394
  %1238 = vmatprep.subr.mxu0 %v399
  %1239 = vmatpush1.msra.mxu0 %v398
  %1240 = vmatprep.subr.mxu0 %v403
  %1241 = vmatpush1.msra.mxu0 %v402
  %1242 = vmatprep.subr.mxu0 %v407
  %1243 = vmatpush1.msra.mxu0 %v406
  %1244 = vmatprep.subr.mxu0 %v411
  %1245 = vmatpush1.msra.mxu0 %v410
  %1246 = vmatprep.subr.mxu0 %v415
  %1247 = vmatpush1.msra.mxu0 %v414
  %1248 = vmatprep.subr.mxu0 %v419
  %1249 = vmatpush1.msra.mxu0 %v418
  %1250 = vmatprep.subr.mxu0 %v423
  %1251 = vmatpush1.msra.mxu0 %v422
  %1252 = vmatprep.subr.mxu0 %v427
  %1253 = vmatpush1.msra.mxu0 %v426
  %1254 = vmatprep.subr.mxu0 %v431
  %1255 = vmatpush1.msra.mxu0 %v430
  %1256 = vmatprep.subr.mxu0 %v435
  %1257 = vmatpush1.msra.mxu0 %v434
  %1258 = vmatprep.subr.mxu0 %v439
  %1259 = vmatpush1.msra.mxu0 %v438
  %1260 = vmatprep.subr.mxu0 %v443
  %1261 = vmatpush1.msra.mxu0 %v442
  %1262 = vmatprep.subr.mxu0 %v447
  %1263 = vmatpush1.msra.mxu0 %v446
  %1264 = vmatprep.subr.mxu0 0.0
  %1265 = vmatpush1.msra.mxu0 0.0
  %1266 = vmatprep.subr.mxu0 0.0
  %1267 = vmatpush1.msra.mxu0 0.0
  %1268 = vmatprep.subr.mxu0 0.0
  %1269 = vmatpush1.msra.mxu0 0.0
  %1270 = vmatprep.subr.mxu0 0.0
  %1271 = vmatpush1.msra.mxu0 0.0
  %1272 = vmatprep.subr.mxu0 0.0
  %1273 = vmatpush1.msra.mxu0 0.0
  %1274 = vmatprep.subr.mxu0 0.0
  %1275 = vmatpush1.msra.mxu0 0.0
  %1276 = vmatprep.subr.mxu0 0.0
  %1277 = vmatpush1.msra.mxu0 0.0
  %1278 = vmatprep.subr.mxu0 0.0
  %1279 = vmatpush1.msra.mxu0 0.0
  %1280 = vmatprep.subr.mxu0 0.0
  %1281 = vmatpush1.msra.mxu0 0.0
  %1282 = vmatprep.subr.mxu0 0.0
  %1283 = vmatpush1.msra.mxu0 0.0
  %1284 = vmatprep.subr.mxu0 0.0
  %1285 = vmatpush1.msra.mxu0 0.0
  %1286 = vmatprep.subr.mxu0 0.0
  %1287 = vmatpush1.msra.mxu0 0.0
  %1288 = vmatprep.subr.mxu0 0.0
  %1289 = vmatpush1.msra.mxu0 0.0
  %1290 = vmatprep.subr.mxu0 0.0
  %1291 = vmatpush1.msra.mxu0 0.0
  %1292 = vmatprep.subr.mxu0 0.0
  %1293 = vmatpush1.msra.mxu0 0.0
  %1294 = vmatprep.subr.mxu0 0.0
  %1295 = vmatpush1.msra.mxu0 0.0
  %1296 = vmatprep.mubr.f32.mxu0 0.0
  %1297 = vmatmul.mubr.f32.gmra.mrb[0].mxu0 %v1153
  %v1298 = vpop.f32.mrb[0].mxu0
  %v1299 = vadd.f32 0.0, %v1298
  %v1300 = vpop.f32.mrb[0].mxu0
  %v1301 = vadd.f32 0.0, %v1300
  %1302 = vdwg.mxu0
  %v1303 = vadd.f32 %v1157, %v1228
  %v1304 = vadd.f32 %v1158, %v1230
  %v1305 = vadd.f32 %v1159, %v1299
  %v1306 = vadd.f32 %v1160, %v1301
  %v1307 = vxor.u32 %v1303, 2147483648
  %v1308 = vmul.f32 %v1307, 1.442695
  %v1309 = vpow.pop %v1308
  %v1310 = vadd.f32 %v1309, 1.0
  %v1311 = vrcp.pop %v1310
  %v1312 = vmul.f32 1.0, %v1311
  %v1313 = vxor.u32 %v1304, 2147483648
  %v1314 = vmul.f32 %v1313, 1.442695
  %v1315 = vpow.pop %v1314
  %v1316 = vadd.f32 %v1315, 1.0
  %v1317 = vrcp.pop %v1316
  %v1318 = vmul.f32 1.0, %v1317
  %v1319 = vtanh.pop %v1305
  %v1320 = vxor.u32 %v1306, 2147483648
  %v1321 = vmul.f32 %v1320, 1.442695
  %v1322 = vpow.pop %v1321
  %v1323 = vadd.f32 %v1322, 1.0
  %v1324 = vrcp.pop %v1323
  %v1325 = vmul.f32 1.0, %v1324
  %v1326 = vmul.f32 %v1318, %v1151
  %v1327 = vmul.f32 %v1312, %v1319
  %v1328 = vadd.f32 %v1326, %v1327
  %v1329 = vtanh.pop %v1328
  %v1330 = vmul.f32 %v1325, %v1329
  %s1331 = scalar_lea.vmem [#allocation3], 32
  %1332 = vst [vmem:[%s1331] sm:$0xff] %v1330
  %s1333 = scalar_lea.vmem [#allocation2], 160
  %v1334 = vld [vmem:[%s1333] sm:$0xff]
  %v1335 = vld [vmem:[%s1333 + $0x8] sm:$0xff]
  %v1336 = vld [vmem:[%s1333 + $0x10] sm:$0xff]
  %v1337 = vld [vmem:[%s1333 + $0x18] sm:$0xff]
  %1338 = vmatprep.subr.mxu0 %v385
  %1339 = vmatpush1.msra.mxu0 %v384
  %1340 = vmatprep.subr.mxu0 %v389
  %1341 = vmatpush1.msra.mxu0 %v388
  %1342 = vmatprep.subr.mxu0 %v393
  %1343 = vmatpush1.msra.mxu0 %v392
  %1344 = vmatprep.subr.mxu0 %v397
  %1345 = vmatpush1.msra.mxu0 %v396
  %1346 = vmatprep.subr.mxu0 %v401
  %1347 = vmatpush1.msra.mxu0 %v400
  %1348 = vmatprep.subr.mxu0 %v405
  %1349 = vmatpush1.msra.mxu0 %v404
  %1350 = vmatprep.subr.mxu0 %v409
  %1351 = vmatpush1.msra.mxu0 %v408
  %1352 = vmatprep.subr.mxu0 %v413
  %1353 = vmatpush1.msra.mxu0 %v412
  %1354 = vmatprep.subr.mxu0 %v417
  %1355 = vmatpush1.msra.mxu0 %v416
  %1356 = vmatprep.subr.mxu0 %v421
  %1357 = vmatpush1.msra.mxu0 %v420
  %1358 = vmatprep.subr.mxu0 %v425
  %1359 = vmatpush1.msra.mxu0 %v424
  %1360 = vmatprep.subr.mxu0 %v429
  %1361 = vmatpush1.msra.mxu0 %v428
  %1362 = vmatprep.subr.mxu0 %v433
  %1363 = vmatpush1.msra.mxu0 %v432
  %1364 = vmatprep.subr.mxu0 %v437
  %1365 = vmatpush1.msra.mxu0 %v436
  %1366 = vmatprep.subr.mxu0 %v441
  %1367 = vmatpush1.msra.mxu0 %v440
  %1368 = vmatprep.subr.mxu0 %v445
  %1369 = vmatpush1.msra.mxu0 %v444
  %1370 = vmatprep.subr.mxu0 0.0
  %1371 = vmatpush1.msra.mxu0 0.0
  %1372 = vmatprep.subr.mxu0 0.0
  %1373 = vmatpush1.msra.mxu0 0.0
  %1374 = vmatprep.subr.mxu0 0.0
  %1375 = vmatpush1.msra.mxu0 0.0
  %1376 = vmatprep.subr.mxu0 0.0
  %1377 = vmatpush1.msra.mxu0 0.0
  %1378 = vmatprep.subr.mxu0 0.0
  %1379 = vmatpush1.msra.mxu0 0.0
  %1380 = vmatprep.subr.mxu0 0.0
  %1381 = vmatpush1.msra.mxu0 0.0
  %1382 = vmatprep.subr.mxu0 0.0
  %1383 = vmatpush1.msra.mxu0 0.0
  %1384 = vmatprep.subr.mxu0 0.0
  %1385 = vmatpush1.msra.mxu0 0.0
  %1386 = vmatprep.subr.mxu0 0.0
  %1387 = vmatpush1.msra.mxu0 0.0
  %1388 = vmatprep.subr.mxu0 0.0
  %1389 = vmatpush1.msra.mxu0 0.0
  %1390 = vmatprep.subr.mxu0 0.0
  %1391 = vmatpush1.msra.mxu0 0.0
  %1392 = vmatprep.subr.mxu0 0.0
  %1393 = vmatpush1.msra.mxu0 0.0
  %1394 = vmatprep.subr.mxu0 0.0
  %1395 = vmatpush1.msra.mxu0 0.0
  %1396 = vmatprep.subr.mxu0 0.0
  %1397 = vmatpush1.msra.mxu0 0.0
  %1398 = vmatprep.subr.mxu0 0.0
  %1399 = vmatpush1.msra.mxu0 0.0
  %1400 = vmatprep.subr.mxu0 0.0
  %1401 = vmatpush1.msra.mxu0 0.0
  %1402 = vmatprep.mubr.f32.mxu0 0.0
  %1403 = vmatmul.mubr.f32.gmra.mrb[0].mxu0 %v1330
  %v1404 = vpop.f32.mrb[0].mxu0
  %v1405 = vadd.f32 0.0, %v1404
  %v1406 = vpop.f32.mrb[0].mxu0
  %v1407 = vadd.f32 0.0, %v1406
  %1408 = vdwg.mxu0
  %1409 = vmatprep.subr.mxu0 %v387
  %1410 = vmatpush1.msra.mxu0 %v386
  %1411 = vmatprep.subr.mxu0 %v391
  %1412 = vmatpush1.msra.mxu0 %v390
  %1413 = vmatprep.subr.mxu0 %v395
  %1414 = vmatpush1.msra.mxu0 %v394
  %1415 = vmatprep.subr.mxu0 %v399
  %1416 = vmatpush1.msra.mxu0 %v398
  %1417 = vmatprep.subr.mxu0 %v403
  %1418 = vmatpush1.msra.mxu0 %v402
  %1419 = vmatprep.subr.mxu0 %v407
  %1420 = vmatpush1.msra.mxu0 %v406
  %1421 = vmatprep.subr.mxu0 %v411
  %1422 = vmatpush1.msra.mxu0 %v410
  %1423 = vmatprep.subr.mxu0 %v415
  %1424 = vmatpush1.msra.mxu0 %v414
  %1425 = vmatprep.subr.mxu0 %v419
  %1426 = vmatpush1.msra.mxu0 %v418
  %1427 = vmatprep.subr.mxu0 %v423
  %1428 = vmatpush1.msra.mxu0 %v422
  %1429 = vmatprep.subr.mxu0 %v427
  %1430 = vmatpush1.msra.mxu0 %v426
  %1431 = vmatprep.subr.mxu0 %v431
  %1432 = vmatpush1.msra.mxu0 %v430
  %1433 = vmatprep.subr.mxu0 %v435
  %1434 = vmatpush1.msra.mxu0 %v434
  %1435 = vmatprep.subr.mxu0 %v439
  %1436 = vmatpush1.msra.mxu0 %v438
  %1437 = vmatprep.subr.mxu0 %v443
  %1438 = vmatpush1.msra.mxu0 %v442
  %1439 = vmatprep.subr.mxu0 %v447
  %1440 = vmatpush1.msra.mxu0 %v446
  %1441 = vmatprep.subr.mxu0 0.0
  %1442 = vmatpush1.msra.mxu0 0.0
  %1443 = vmatprep.subr.mxu0 0.0
  %1444 = vmatpush1.msra.mxu0 0.0
  %1445 = vmatprep.subr.mxu0 0.0
  %1446 = vmatpush1.msra.mxu0 0.0
  %1447 = vmatprep.subr.mxu0 0.0
  %1448 = vmatpush1.msra.mxu0 0.0
  %1449 = vmatprep.subr.mxu0 0.0
  %1450 = vmatpush1.msra.mxu0 0.0
  %1451 = vmatprep.subr.mxu0 0.0
  %1452 = vmatpush1.msra.mxu0 0.0
  %1453 = vmatprep.subr.mxu0 0.0
  %1454 = vmatpush1.msra.mxu0 0.0
  %1455 = vmatprep.subr.mxu0 0.0
  %1456 = vmatpush1.msra.mxu0 0.0
  %1457 = vmatprep.subr.mxu0 0.0
  %1458 = vmatpush1.msra.mxu0 0.0
  %1459 = vmatprep.subr.mxu0 0.0
  %1460 = vmatpush1.msra.mxu0 0.0
  %1461 = vmatprep.subr.mxu0 0.0
  %1462 = vmatpush1.msra.mxu0 0.0
  %1463 = vmatprep.subr.mxu0 0.0
  %1464 = vmatpush1.msra.mxu0 0.0
  %1465 = vmatprep.subr.mxu0 0.0
  %1466 = vmatpush1.msra.mxu0 0.0
  %1467 = vmatprep.subr.mxu0 0.0
  %1468 = vmatpush1.msra.mxu0 0.0
  %1469 = vmatprep.subr.mxu0 0.0
  %1470 = vmatpush1.msra.mxu0 0.0
  %1471 = vmatprep.subr.mxu0 0.0
  %1472 = vmatpush1.msra.mxu0 0.0
  %1473 = vmatprep.mubr.f32.mxu0 0.0
  %1474 = vmatmul.mubr.f32.gmra.mrb[0].mxu0 %v1330
  %v1475 = vpop.f32.mrb[0].mxu0
  %v1476 = vadd.f32 0.0, %v1475
  %v1477 = vpop.f32.mrb[0].mxu0
  %v1478 = vadd.f32 0.0, %v1477
  %1479 = vdwg.mxu0
  %v1480 = vadd.f32 %v1334, %v1405
  %v1481 = vadd.f32 %v1335, %v1407
  %v1482 = vadd.f32 %v1336, %v1476
  %v1483 = vadd.f32 %v1337, %v1478
  %v1484 = vxor.u32 %v1480, 2147483648
  %v1485 = vmul.f32 %v1484, 1.442695
  %v1486 = vpow.pop %v1485
  %v1487 = vadd.f32 %v1486, 1.0
  %v1488 = vrcp.pop %v1487
  %v1489 = vmul.f32 1.0, %v1488
  %v1490 = vxor.u32 %v1481, 2147483648
  %v1491 = vmul.f32 %v1490, 1.442695
  %v1492 = vpow.pop %v1491
  %v1493 = vadd.f32 %v1492, 1.0
  %v1494 = vrcp.pop %v1493
  %v1495 = vmul.f32 1.0, %v1494
  %v1496 = vtanh.pop %v1482
  %v1497 = vxor.u32 %v1483, 2147483648
  %v1498 = vmul.f32 %v1497, 1.442695
  %v1499 = vpow.pop %v1498
  %v1500 = vadd.f32 %v1499, 1.0
  %v1501 = vrcp.pop %v1500
  %v1502 = vmul.f32 1.0, %v1501
  %v1503 = vmul.f32 %v1495, %v1328
  %v1504 = vmul.f32 %v1489, %v1496
  %v1505 = vadd.f32 %v1503, %v1504
  %v1506 = vtanh.pop %v1505
  %v1507 = vmul.f32 %v1502, %v1506
  %s1508 = scalar_lea.vmem [#allocation3], 40
  %1509 = vst [vmem:[%s1508] sm:$0xff] %v1507
  %s1510 = scalar_lea.vmem [#allocation2], 192
  %v1511 = vld [vmem:[%s1510] sm:$0xff]
  %v1512 = vld [vmem:[%s1510 + $0x8] sm:$0xff]
  %v1513 = vld [vmem:[%s1510 + $0x10] sm:$0xff]
  %v1514 = vld [vmem:[%s1510 + $0x18] sm:$0xff]
  %1515 = vmatprep.subr.mxu0 %v385
  %1516 = vmatpush1.msra.mxu0 %v384
  %1517 = vmatprep.subr.mxu0 %v389
  %1518 = vmatpush1.msra.mxu0 %v388
  %1519 = vmatprep.subr.mxu0 %v393
  %1520 = vmatpush1.msra.mxu0 %v392
  %1521 = vmatprep.subr.mxu0 %v397
  %1522 = vmatpush1.msra.mxu0 %v396
  %1523 = vmatprep.subr.mxu0 %v401
  %1524 = vmatpush1.msra.mxu0 %v400
  %1525 = vmatprep.subr.mxu0 %v405
  %1526 = vmatpush1.msra.mxu0 %v404
  %1527 = vmatprep.subr.mxu0 %v409
  %1528 = vmatpush1.msra.mxu0 %v408
  %1529 = vmatprep.subr.mxu0 %v413
  %1530 = vmatpush1.msra.mxu0 %v412
  %1531 = vmatprep.subr.mxu0 %v417
  %1532 = vmatpush1.msra.mxu0 %v416
  %1533 = vmatprep.subr.mxu0 %v421
  %1534 = vmatpush1.msra.mxu0 %v420
  %1535 = vmatprep.subr.mxu0 %v425
  %1536 = vmatpush1.msra.mxu0 %v424
  %1537 = vmatprep.subr.mxu0 %v429
  %1538 = vmatpush1.msra.mxu0 %v428
  %1539 = vmatprep.subr.mxu0 %v433
  %1540 = vmatpush1.msra.mxu0 %v432
  %1541 = vmatprep.subr.mxu0 %v437
  %1542 = vmatpush1.msra.mxu0 %v436
  %1543 = vmatprep.subr.mxu0 %v441
  %1544 = vmatpush1.msra.mxu0 %v440
  %1545 = vmatprep.subr.mxu0 %v445
  %1546 = vmatpush1.msra.mxu0 %v444
  %1547 = vmatprep.subr.mxu0 0.0
  %1548 = vmatpush1.msra.mxu0 0.0
  %1549 = vmatprep.subr.mxu0 0.0
  %1550 = vmatpush1.msra.mxu0 0.0
  %1551 = vmatprep.subr.mxu0 0.0
  %1552 = vmatpush1.msra.mxu0 0.0
  %1553 = vmatprep.subr.mxu0 0.0
  %1554 = vmatpush1.msra.mxu0 0.0
  %1555 = vmatprep.subr.mxu0 0.0
  %1556 = vmatpush1.msra.mxu0 0.0
  %1557 = vmatprep.subr.mxu0 0.0
  %1558 = vmatpush1.msra.mxu0 0.0
  %1559 = vmatprep.subr.mxu0 0.0
  %1560 = vmatpush1.msra.mxu0 0.0
  %1561 = vmatprep.subr.mxu0 0.0
  %1562 = vmatpush1.msra.mxu0 0.0
  %1563 = vmatprep.subr.mxu0 0.0
  %1564 = vmatpush1.msra.mxu0 0.0
  %1565 = vmatprep.subr.mxu0 0.0
  %1566 = vmatpush1.msra.mxu0 0.0
  %1567 = vmatprep.subr.mxu0 0.0
  %1568 = vmatpush1.msra.mxu0 0.0
  %1569 = vmatprep.subr.mxu0 0.0
  %1570 = vmatpush1.msra.mxu0 0.0
  %1571 = vmatprep.subr.mxu0 0.0
  %1572 = vmatpush1.msra.mxu0 0.0
  %1573 = vmatprep.subr.mxu0 0.0
  %1574 = vmatpush1.msra.mxu0 0.0
  %1575 = vmatprep.subr.mxu0 0.0
  %1576 = vmatpush1.msra.mxu0 0.0
  %1577 = vmatprep.subr.mxu0 0.0
  %1578 = vmatpush1.msra.mxu0 0.0
  %1579 = vmatprep.mubr.f32.mxu0 0.0
  %1580 = vmatmul.mubr.f32.gmra.mrb[0].mxu0 %v1507
  %v1581 = vpop.f32.mrb[0].mxu0
  %v1582 = vadd.f32 0.0, %v1581
  %v1583 = vpop.f32.mrb[0].mxu0
  %v1584 = vadd.f32 0.0, %v1583
  %1585 = vdwg.mxu0
  %1586 = vmatprep.subr.mxu0 %v387
  %1587 = vmatpush1.msra.mxu0 %v386
  %1588 = vmatprep.subr.mxu0 %v391
  %1589 = vmatpush1.msra.mxu0 %v390
  %1590 = vmatprep.subr.mxu0 %v395
  %1591 = vmatpush1.msra.mxu0 %v394
  %1592 = vmatprep.subr.mxu0 %v399
  %1593 = vmatpush1.msra.mxu0 %v398
  %1594 = vmatprep.subr.mxu0 %v403
  %1595 = vmatpush1.msra.mxu0 %v402
  %1596 = vmatprep.subr.mxu0 %v407
  %1597 = vmatpush1.msra.mxu0 %v406
  %1598 = vmatprep.subr.mxu0 %v411
  %1599 = vmatpush1.msra.mxu0 %v410
  %1600 = vmatprep.subr.mxu0 %v415
  %1601 = vmatpush1.msra.mxu0 %v414
  %1602 = vmatprep.subr.mxu0 %v419
  %1603 = vmatpush1.msra.mxu0 %v418
  %1604 = vmatprep.subr.mxu0 %v423
  %1605 = vmatpush1.msra.mxu0 %v422
  %1606 = vmatprep.subr.mxu0 %v427
  %1607 = vmatpush1.msra.mxu0 %v426
  %1608 = vmatprep.subr.mxu0 %v431
  %1609 = vmatpush1.msra.mxu0 %v430
  %1610 = vmatprep.subr.mxu0 %v435
  %1611 = vmatpush1.msra.mxu0 %v434
  %1612 = vmatprep.subr.mxu0 %v439
  %1613 = vmatpush1.msra.mxu0 %v438
  %1614 = vmatprep.subr.mxu0 %v443
  %1615 = vmatpush1.msra.mxu0 %v442
  %1616 = vmatprep.subr.mxu0 %v447
  %1617 = vmatpush1.msra.mxu0 %v446
  %1618 = vmatprep.subr.mxu0 0.0
  %1619 = vmatpush1.msra.mxu0 0.0
  %1620 = vmatprep.subr.mxu0 0.0
  %1621 = vmatpush1.msra.mxu0 0.0
  %1622 = vmatprep.subr.mxu0 0.0
  %1623 = vmatpush1.msra.mxu0 0.0
  %1624 = vmatprep.subr.mxu0 0.0
  %1625 = vmatpush1.msra.mxu0 0.0
  %1626 = vmatprep.subr.mxu0 0.0
  %1627 = vmatpush1.msra.mxu0 0.0
  %1628 = vmatprep.subr.mxu0 0.0
  %1629 = vmatpush1.msra.mxu0 0.0
  %1630 = vmatprep.subr.mxu0 0.0
  %1631 = vmatpush1.msra.mxu0 0.0
  %1632 = vmatprep.subr.mxu0 0.0
  %1633 = vmatpush1.msra.mxu0 0.0
  %1634 = vmatprep.subr.mxu0 0.0
  %1635 = vmatpush1.msra.mxu0 0.0
  %1636 = vmatprep.subr.mxu0 0.0
  %1637 = vmatpush1.msra.mxu0 0.0
  %1638 = vmatprep.subr.mxu0 0.0
  %1639 = vmatpush1.msra.mxu0 0.0
  %1640 = vmatprep.subr.mxu0 0.0
  %1641 = vmatpush1.msra.mxu0 0.0
  %1642 = vmatprep.subr.mxu0 0.0
  %1643 = vmatpush1.msra.mxu0 0.0
  %1644 = vmatprep.subr.mxu0 0.0
  %1645 = vmatpush1.msra.mxu0 0.0
  %1646 = vmatprep.subr.mxu0 0.0
  %1647 = vmatpush1.msra.mxu0 0.0
  %1648 = vmatprep.subr.mxu0 0.0
  %1649 = vmatpush1.msra.mxu0 0.0
  %1650 = vmatprep.mubr.f32.mxu0 0.0
  %1651 = vmatmul.mubr.f32.gmra.mrb[0].mxu0 %v1507
  %v1652 = vpop.f32.mrb[0].mxu0
  %v1653 = vadd.f32 0.0, %v1652
  %v1654 = vpop.f32.mrb[0].mxu0
  %v1655 = vadd.f32 0.0, %v1654
  %1656 = vdwg.mxu0
  %v1657 = vadd.f32 %v1511, %v1582
  %v1658 = vadd.f32 %v1512, %v1584
  %v1659 = vadd.f32 %v1513, %v1653
  %v1660 = vadd.f32 %v1514, %v1655
  %v1661 = vxor.u32 %v1657, 2147483648
  %v1662 = vmul.f32 %v1661, 1.442695
  %v1663 = vpow.pop %v1662
  %v1664 = vadd.f32 %v1663, 1.0
  %v1665 = vrcp.pop %v1664
  %v1666 = vmul.f32 1.0, %v1665
  %v1667 = vxor.u32 %v1658, 2147483648
  %v1668 = vmul.f32 %v1667, 1.442695
  %v1669 = vpow.pop %v1668
  %v1670 = vadd.f32 %v1669, 1.0
  %v1671 = vrcp.pop %v1670
  %v1672 = vmul.f32 1.0, %v1671
  %v1673 = vtanh.pop %v1659
  %v1674 = vxor.u32 %v1660, 2147483648
  %v1675 = vmul.f32 %v1674, 1.442695
  %v1676 = vpow.pop %v1675
  %v1677 = vadd.f32 %v1676, 1.0
  %v1678 = vrcp.pop %v1677
  %v1679 = vmul.f32 1.0, %v1678
  %v1680 = vmul.f32 %v1672, %v1505
  %v1681 = vmul.f32 %v1666, %v1673
  %v1682 = vadd.f32 %v1680, %v1681
  %v1683 = vtanh.pop %v1682
  %v1684 = vmul.f32 %v1679, %v1683
  %s1685 = scalar_lea.vmem [#allocation3], 48
  %1686 = vst [vmem:[%s1685] sm:$0xff] %v1684
  %s1687 = scalar_lea.vmem [#allocation2], 224
  %v1688 = vld [vmem:[%s1687] sm:$0xff]
  %v1689 = vld [vmem:[%s1687 + $0x8] sm:$0xff]
  %v1690 = vld [vmem:[%s1687 + $0x10] sm:$0xff]
  %v1691 = vld [vmem:[%s1687 + $0x18] sm:$0xff]
  %1692 = vmatprep.subr.mxu0 %v385
  %1693 = vmatpush1.msra.mxu0 %v384
  %1694 = vmatprep.subr.mxu0 %v389
  %1695 = vmatpush1.msra.mxu0 %v388
  %1696 = vmatprep.subr.mxu0 %v393
  %1697 = vmatpush1.msra.mxu0 %v392
  %1698 = vmatprep.subr.mxu0 %v397
  %1699 = vmatpush1.msra.mxu0 %v396
  %1700 = vmatprep.subr.mxu0 %v401
  %1701 = vmatpush1.msra.mxu0 %v400
  %1702 = vmatprep.subr.mxu0 %v405
  %1703 = vmatpush1.msra.mxu0 %v404
  %1704 = vmatprep.subr.mxu0 %v409
  %1705 = vmatpush1.msra.mxu0 %v408
  %1706 = vmatprep.subr.mxu0 %v413
  %1707 = vmatpush1.msra.mxu0 %v412
  %1708 = vmatprep.subr.mxu0 %v417
  %1709 = vmatpush1.msra.mxu0 %v416
  %1710 = vmatprep.subr.mxu0 %v421
  %1711 = vmatpush1.msra.mxu0 %v420
  %1712 = vmatprep.subr.mxu0 %v425
  %1713 = vmatpush1.msra.mxu0 %v424
  %1714 = vmatprep.subr.mxu0 %v429
  %1715 = vmatpush1.msra.mxu0 %v428
  %1716 = vmatprep.subr.mxu0 %v433
  %1717 = vmatpush1.msra.mxu0 %v432
  %1718 = vmatprep.subr.mxu0 %v437
  %1719 = vmatpush1.msra.mxu0 %v436
  %1720 = vmatprep.subr.mxu0 %v441
  %1721 = vmatpush1.msra.mxu0 %v440
  %1722 = vmatprep.subr.mxu0 %v445
  %1723 = vmatpush1.msra.mxu0 %v444
  %1724 = vmatprep.subr.mxu0 0.0
  %1725 = vmatpush1.msra.mxu0 0.0
  %1726 = vmatprep.subr.mxu0 0.0
  %1727 = vmatpush1.msra.mxu0 0.0
  %1728 = vmatprep.subr.mxu0 0.0
  %1729 = vmatpush1.msra.mxu0 0.0
  %1730 = vmatprep.subr.mxu0 0.0
  %1731 = vmatpush1.msra.mxu0 0.0
  %1732 = vmatprep.subr.mxu0 0.0
  %1733 = vmatpush1.msra.mxu0 0.0
  %1734 = vmatprep.subr.mxu0 0.0
  %1735 = vmatpush1.msra.mxu0 0.0
  %1736 = vmatprep.subr.mxu0 0.0
  %1737 = vmatpush1.msra.mxu0 0.0
  %1738 = vmatprep.subr.mxu0 0.0
  %1739 = vmatpush1.msra.mxu0 0.0
  %1740 = vmatprep.subr.mxu0 0.0
  %1741 = vmatpush1.msra.mxu0 0.0
  %1742 = vmatprep.subr.mxu0 0.0
  %1743 = vmatpush1.msra.mxu0 0.0
  %1744 = vmatprep.subr.mxu0 0.0
  %1745 = vmatpush1.msra.mxu0 0.0
  %1746 = vmatprep.subr.mxu0 0.0
  %1747 = vmatpush1.msra.mxu0 0.0
  %1748 = vmatprep.subr.mxu0 0.0
  %1749 = vmatpush1.msra.mxu0 0.0
  %1750 = vmatprep.subr.mxu0 0.0
  %1751 = vmatpush1.msra.mxu0 0.0
  %1752 = vmatprep.subr.mxu0 0.0
  %1753 = vmatpush1.msra.mxu0 0.0
  %1754 = vmatprep.subr.mxu0 0.0
  %1755 = vmatpush1.msra.mxu0 0.0
  %1756 = vmatprep.mubr.f32.mxu0 0.0
  %1757 = vmatmul.mubr.f32.gmra.mrb[0].mxu0 %v1684
  %v1758 = vpop.f32.mrb[0].mxu0
  %v1759 = vadd.f32 0.0, %v1758
  %v1760 = vpop.f32.mrb[0].mxu0
  %v1761 = vadd.f32 0.0, %v1760
  %1762 = vdwg.mxu0
  %1763 = vmatprep.subr.mxu0 %v387
  %1764 = vmatpush1.msra.mxu0 %v386
  %1765 = vmatprep.subr.mxu0 %v391
  %1766 = vmatpush1.msra.mxu0 %v390
  %1767 = vmatprep.subr.mxu0 %v395
  %1768 = vmatpush1.msra.mxu0 %v394
  %1769 = vmatprep.subr.mxu0 %v399
  %1770 = vmatpush1.msra.mxu0 %v398
  %1771 = vmatprep.subr.mxu0 %v403
  %1772 = vmatpush1.msra.mxu0 %v402
  %1773 = vmatprep.subr.mxu0 %v407
  %1774 = vmatpush1.msra.mxu0 %v406
  %1775 = vmatprep.subr.mxu0 %v411
  %1776 = vmatpush1.msra.mxu0 %v410
  %1777 = vmatprep.subr.mxu0 %v415
  %1778 = vmatpush1.msra.mxu0 %v414
  %1779 = vmatprep.subr.mxu0 %v419
  %1780 = vmatpush1.msra.mxu0 %v418
  %1781 = vmatprep.subr.mxu0 %v423
  %1782 = vmatpush1.msra.mxu0 %v422
  %1783 = vmatprep.subr.mxu0 %v427
  %1784 = vmatpush1.msra.mxu0 %v426
  %1785 = vmatprep.subr.mxu0 %v431
  %1786 = vmatpush1.msra.mxu0 %v430
  %1787 = vmatprep.subr.mxu0 %v435
  %1788 = vmatpush1.msra.mxu0 %v434
  %1789 = vmatprep.subr.mxu0 %v439
  %1790 = vmatpush1.msra.mxu0 %v438
  %1791 = vmatprep.subr.mxu0 %v443
  %1792 = vmatpush1.msra.mxu0 %v442
  %1793 = vmatprep.subr.mxu0 %v447
  %1794 = vmatpush1.msra.mxu0 %v446
  %1795 = vmatprep.subr.mxu0 0.0
  %1796 = vmatpush1.msra.mxu0 0.0
  %1797 = vmatprep.subr.mxu0 0.0
  %1798 = vmatpush1.msra.mxu0 0.0
  %1799 = vmatprep.subr.mxu0 0.0
  %1800 = vmatpush1.msra.mxu0 0.0
  %1801 = vmatprep.subr.mxu0 0.0
  %1802 = vmatpush1.msra.mxu0 0.0
  %1803 = vmatprep.subr.mxu0 0.0
  %1804 = vmatpush1.msra.mxu0 0.0
  %1805 = vmatprep.subr.mxu0 0.0
  %1806 = vmatpush1.msra.mxu0 0.0
  %1807 = vmatprep.subr.mxu0 0.0
  %1808 = vmatpush1.msra.mxu0 0.0
  %1809 = vmatprep.subr.mxu0 0.0
  %1810 = vmatpush1.msra.mxu0 0.0
  %1811 = vmatprep.subr.mxu0 0.0
  %1812 = vmatpush1.msra.mxu0 0.0
  %1813 = vmatprep.subr.mxu0 0.0
  %1814 = vmatpush1.msra.mxu0 0.0
  %1815 = vmatprep.subr.mxu0 0.0
  %1816 = vmatpush1.msra.mxu0 0.0
  %1817 = vmatprep.subr.mxu0 0.0
  %1818 = vmatpush1.msra.mxu0 0.0
  %1819 = vmatprep.subr.mxu0 0.0
  %1820 = vmatpush1.msra.mxu0 0.0
  %1821 = vmatprep.subr.mxu0 0.0
  %1822 = vmatpush1.msra.mxu0 0.0
  %1823 = vmatprep.subr.mxu0 0.0
  %1824 = vmatpush1.msra.mxu0 0.0
  %1825 = vmatprep.subr.mxu0 0.0
  %1826 = vmatpush1.msra.mxu0 0.0
  %1827 = vmatprep.mubr.f32.mxu0 0.0
  %1828 = vmatmul.mubr.f32.gmra.mrb[0].mxu0 %v1684
  %v1829 = vpop.f32.mrb[0].mxu0
  %v1830 = vadd.f32 0.0, %v1829
  %v1831 = vpop.f32.mrb[0].mxu0
  %v1832 = vadd.f32 0.0, %v1831
  %1833 = vdwg.mxu0
  %v1834 = vadd.f32 %v1688, %v1759
  %v1835 = vadd.f32 %v1689, %v1761
  %v1836 = vadd.f32 %v1690, %v1830
  %v1837 = vadd.f32 %v1691, %v1832
  %v1838 = vxor.u32 %v1834, 2147483648
  %v1839 = vmul.f32 %v1838, 1.442695
  %v1840 = vpow.pop %v1839
  %v1841 = vadd.f32 %v1840, 1.0
  %v1842 = vrcp.pop %v1841
  %v1843 = vmul.f32 1.0, %v1842
  %v1844 = vxor.u32 %v1835, 2147483648
  %v1845 = vmul.f32 %v1844, 1.442695
  %v1846 = vpow.pop %v1845
  %v1847 = vadd.f32 %v1846, 1.0
  %v1848 = vrcp.pop %v1847
  %v1849 = vmul.f32 1.0, %v1848
  %v1850 = vtanh.pop %v1836
  %v1851 = vxor.u32 %v1837, 2147483648
  %v1852 = vmul.f32 %v1851, 1.442695
  %v1853 = vpow.pop %v1852
  %v1854 = vadd.f32 %v1853, 1.0
  %v1855 = vrcp.pop %v1854
  %v1856 = vmul.f32 1.0, %v1855
  %v1857 = vmul.f32 %v1849, %v1682
  %v1858 = vmul.f32 %v1843, %v1850
  %v1859 = vadd.f32 %v1857, %v1858
  %v1860 = vtanh.pop %v1859
  %v1861 = vmul.f32 %v1856, %v1860
  %s1862 = scalar_lea.vmem [#allocation3], 56
  %1863 = vst [vmem:[%s1862] sm:$0xff] %v1861
  %1864 = vst [vmem:[%s9] sm:$0xff] %v1861
  %1865 = vst [vmem:[%s10] sm:$0xff] %v1859
  %v1866 = vld [vmem:[#allocation3] sm:$0xff]
  %v1867 = vld [vmem:[#allocation3 + $0x8] sm:$0xff]
  %v1868 = vld [vmem:[#allocation3 + $0x10] sm:$0xff]
  %v1869 = vld [vmem:[#allocation3 + $0x18] sm:$0xff]
  %v1870 = vld [vmem:[#allocation3 + $0x20] sm:$0xff]
  %v1871 = vld [vmem:[#allocation3 + $0x28] sm:$0xff]
  %v1872 = vld [vmem:[#allocation3 + $0x30] sm:$0xff]
  %v1873 = vld [vmem:[#allocation3 + $0x38] sm:$0xff]
  %v1874 = vld [vmem:[%s6] sm:$0xff]
  %v1875 = vld [vmem:[%s6 + $0x8] sm:$0xff]
  %v1876 = vld [vmem:[%s6 + $0x10] sm:$0xff]
  %v1877 = vld [vmem:[%s6 + $0x18] sm:$0xff]
  %v1878 = vld [vmem:[%s6 + $0x20] sm:$0xff]
  %v1879 = vld [vmem:[%s6 + $0x28] sm:$0xff]
  %v1880 = vld [vmem:[%s6 + $0x30] sm:$0xff]
  %v1881 = vld [vmem:[%s6 + $0x38] sm:$0xff]
  %v1882 = vld [vmem:[%s6 + $0x40] sm:$0xff]
  %v1883 = vld [vmem:[%s6 + $0x48] sm:$0xff]
  %v1884 = vld [vmem:[%s6 + $0x50] sm:$0xff]
  %v1885 = vld [vmem:[%s6 + $0x58] sm:$0xff]
  %v1886 = vld [vmem:[%s6 + $0x60] sm:$0xff]
  %v1887 = vld [vmem:[%s6 + $0x68] sm:$0xff]
  %v1888 = vld [vmem:[%s6 + $0x70] sm:$0xff]
  %v1889 = vld [vmem:[%s6 + $0x78] sm:$0xff]
  %v1890 = vld [vmem:[%s7] sm:$0x1]
  %v1892 = vlaneseq
  %v1893 = vshrl.u32 %v1892, 7
  %v1894 = vsub.s32 0, %v1893
  %v1895 = vrot.slane %v1890, %v1894
  %1897 = vmatprep.subr.mxu0 0.0
  %1898 = vmatpush1.msra.mxu0 %v1874
  %1899 = vmatprep.subr.mxu0 0.0
  %1900 = vmatpush1.msra.mxu0 %v1875
  %1901 = vmatprep.subr.mxu0 0.0
  %1902 = vmatpush1.msra.mxu0 %v1876
  %1903 = vmatprep.subr.mxu0 0.0
  %1904 = vmatpush1.msra.mxu0 %v1877
  %1905 = vmatprep.subr.mxu0 0.0
  %1906 = vmatpush1.msra.mxu0 %v1878
  %1907 = vmatprep.subr.mxu0 0.0
  %1908 = vmatpush1.msra.mxu0 %v1879
  %1909 = vmatprep.subr.mxu0 0.0
  %1910 = vmatpush1.msra.mxu0 %v1880
  %1911 = vmatprep.subr.mxu0 0.0
  %1912 = vmatpush1.msra.mxu0 %v1881
  %1913 = vmatprep.subr.mxu0 0.0
  %1914 = vmatpush1.msra.mxu0 %v1882
  %1915 = vmatprep.subr.mxu0 0.0
  %1916 = vmatpush1.msra.mxu0 %v1883
  %1917 = vmatprep.subr.mxu0 0.0
  %1918 = vmatpush1.msra.mxu0 %v1884
  %1919 = vmatprep.subr.mxu0 0.0
  %1920 = vmatpush1.msra.mxu0 %v1885
  %1921 = vmatprep.subr.mxu0 0.0
  %1922 = vmatpush1.msra.mxu0 %v1886
  %1923 = vmatprep.subr.mxu0 0.0
  %1924 = vmatpush1.msra.mxu0 %v1887
  %1925 = vmatprep.subr.mxu0 0.0
  %1926 = vmatpush1.msra.mxu0 %v1888
  %1927 = vmatprep.subr.mxu0 0.0
  %1928 = vmatpush1.msra.mxu0 %v1889
  %1929 = vmatprep.subr.mxu0 0.0
  %1930 = vmatpush1.msra.mxu0 0.0
  %1931 = vmatprep.subr.mxu0 0.0
  %1932 = vmatpush1.msra.mxu0 0.0
  %1933 = vmatprep.subr.mxu0 0.0
  %1934 = vmatpush1.msra.mxu0 0.0
  %1935 = vmatprep.subr.mxu0 0.0
  %1936 = vmatpush1.msra.mxu0 0.0
  %1937 = vmatprep.subr.mxu0 0.0
  %1938 = vmatpush1.msra.mxu0 0.0
  %1939 = vmatprep.subr.mxu0 0.0
  %1940 = vmatpush1.msra.mxu0 0.0
  %1941 = vmatprep.subr.mxu0 0.0
  %1942 = vmatpush1.msra.mxu0 0.0
  %1943 = vmatprep.subr.mxu0 0.0
  %1944 = vmatpush1.msra.mxu0 0.0
  %1945 = vmatprep.subr.mxu0 0.0
  %1946 = vmatpush1.msra.mxu0 0.0
  %1947 = vmatprep.subr.mxu0 0.0
  %1948 = vmatpush1.msra.mxu0 0.0
  %1949 = vmatprep.subr.mxu0 0.0
  %1950 = vmatpush1.msra.mxu0 0.0
  %1951 = vmatprep.subr.mxu0 0.0
  %1952 = vmatpush1.msra.mxu0 0.0
  %1953 = vmatprep.subr.mxu0 0.0
  %1954 = vmatpush1.msra.mxu0 0.0
  %1955 = vmatprep.subr.mxu0 0.0
  %1956 = vmatpush1.msra.mxu0 0.0
  %1957 = vmatprep.subr.mxu0 0.0
  %1958 = vmatpush1.msra.mxu0 0.0
  %1959 = vmatprep.subr.mxu0 0.0
  %1960 = vmatpush1.msra.mxu0 0.0
  %1961 = vmatprep.mubr.f32.mxu0 0.0
  %1962 = vmatmul.mubr.f32.gmra.mrb[0].mxu0 %v1866
  %v1963 = vpop.f32.mrb[0].mxu0
  %v1964 = vadd.f32 %v1895, %v1963
  %v1965 = vpop.f32.mrb[0].mxu0
  %1966 = vmatprep.mubr.f32.mxu0 0.0
  %1967 = vmatmul.mubr.f32.gmra.mrb[0].mxu0 %v1867
  %v1968 = vpop.f32.mrb[0].mxu0
  %v1969 = vadd.f32 %v1895, %v1968
  %v1970 = vpop.f32.mrb[0].mxu0
  %1971 = vmatprep.mubr.f32.mxu0 0.0
  %1972 = vmatmul.mubr.f32.gmra.mrb[0].mxu0 %v1868
  %v1973 = vpop.f32.mrb[0].mxu0
  %v1974 = vadd.f32 %v1895, %v1973
  %v1975 = vpop.f32.mrb[0].mxu0
  %1976 = vmatprep.mubr.f32.mxu0 0.0
  %1977 = vmatmul.mubr.f32.gmra.mrb[0].mxu0 %v1869
  %v1978 = vpop.f32.mrb[0].mxu0
  %v1979 = vadd.f32 %v1895, %v1978
  %v1980 = vpop.f32.mrb[0].mxu0
  %1981 = vmatprep.mubr.f32.mxu0 0.0
  %1982 = vmatmul.mubr.f32.gmra.mrb[0].mxu0 %v1870
  %v1983 = vpop.f32.mrb[0].mxu0
  %v1984 = vadd.f32 %v1895, %v1983
  %v1985 = vpop.f32.mrb[0].mxu0
  %1986 = vmatprep.mubr.f32.mxu0 0.0
  %1987 = vmatmul.mubr.f32.gmra.mrb[0].mxu0 %v1871
  %v1988 = vpop.f32.mrb[0].mxu0
  %v1989 = vadd.f32 %v1895, %v1988
  %v1990 = vpop.f32.mrb[0].mxu0
  %1991 = vmatprep.mubr.f32.mxu0 0.0
  %1992 = vmatmul.mubr.f32.gmra.mrb[0].mxu0 %v1872
  %v1993 = vpop.f32.mrb[0].mxu0
  %v1994 = vadd.f32 %v1895, %v1993
  %v1995 = vpop.f32.mrb[0].mxu0
  %1996 = vmatprep.mubr.f32.mxu0 0.0
  %1997 = vmatmul.mubr.f32.gmra.mrb[0].mxu0 %v1873
  %v1998 = vpop.f32.mrb[0].mxu0
  %v1999 = vadd.f32 %v1895, %v1998
  %v2000 = vpop.f32.mrb[0].mxu0
  %2001 = vdwg.mxu0
  %2002 = vst [vmem:[%s8] sm:$0xff] %v1964
  %2003 = vst [vmem:[%s8 + $0x8] sm:$0xff] %v1969
  %2004 = vst [vmem:[%s8 + $0x10] sm:$0xff] %v1974
  %2005 = vst [vmem:[%s8 + $0x18] sm:$0xff] %v1979
  %2006 = vst [vmem:[%s8 + $0x20] sm:$0xff] %v1984
  %2007 = vst [vmem:[%s8 + $0x28] sm:$0xff] %v1989
  %2008 = vst [vmem:[%s8 + $0x30] sm:$0xff] %v1994
  %2009 = vst [vmem:[%s8 + $0x38] sm:$0xff] %v1999
  // Predicated region
  $region34: #{decoder_forward.1} parent=0 // pred_check
    _
  $region35: #{decoder_forward.1} parent=0 // pred_check_branch
    %2011 = sbr.rel (0) target = $region37
  $region36: #{decoder_forward.1} parent=0 // pred_region
    _
  $region37: #{decoder_forward.1} parent=0 // pred_fallthru
    _
  // Predicated region
  $region38: #{decoder_forward.1} parent=0 // pred_check
    _
  $region39: #{decoder_forward.1} parent=0 // pred_check_branch
    %2013 = sbr.rel (0) target = $region41
  $region40: #{decoder_forward.1} parent=0 // pred_region
    _
  $region41: #{decoder_forward.1} parent=0 // pred_fallthru
    _
  // Predicated region
  $region42: #{decoder_forward.1} parent=0 // pred_check
    _
  $region43: #{decoder_forward.1} parent=0 // pred_check_branch
    %2015 = sbr.rel (0) target = $region45
  $region44: #{decoder_forward.1} parent=0 // pred_region
    _
  $region45: #{decoder_forward.1} parent=0 // pred_fallthru
    _
  // Predicated region
  $region46: #{decoder_forward.1} parent=0 // pred_check
    _
  $region47: #{decoder_forward.1} parent=0 // pred_check_branch
    %2017 = sbr.rel (0) target = $region49
  $region48: #{decoder_forward.1} parent=0 // pred_region
    _
  $region49: #{decoder_forward.1} parent=0 // pred_fallthru
    _
  // Predicated region
  $region50: #{decoder_forward.1} parent=0 // pred_check
    _
  $region51: #{decoder_forward.1} parent=0 // pred_check_branch
    %2019 = sbr.rel (0) target = $region53
  $region52: #{decoder_forward.1} parent=0 // pred_region
    _
  $region53: #{decoder_forward.1} parent=0 // pred_fallthru
    _
  // Predicated region
  $region54: #{decoder_forward.1} parent=0 // pred_check
    _
  $region55: #{decoder_forward.1} parent=0 // pred_check_branch
    %2021 = sbr.rel (0) target = $region57
  $region56: #{decoder_forward.1} parent=0 // pred_region
    _
  $region57: #{decoder_forward.1} parent=0 // pred_fallthru
    _

</llo_original>
